<compile_context>
chip_gen: v7x
topology: tpu7x:2x2x1
jax: 0.10.0
libtpu: 0.0.40
codegen_flags: <defaults>
</compile_context>

<pallas_src>
import functools

import jax
import jax.numpy as jnp
from jax.experimental import pallas as pl
from jax.experimental.pallas import tpu as pltpu


_SELU_ALPHA = 1.6732632423543772
_SELU_SCALE = 1.0507009873554805


def _selu(v):
    # Matches torch.nn.functional.selu (f32 elementwise math). selu(0) == 0
    # exactly, so zero-padded lanes stay exactly zero through the network.
    pos = jnp.maximum(v, 0.0)
    neg = _SELU_ALPHA * (jnp.exp(jnp.minimum(v, 0.0)) - 1.0)
    return _SELU_SCALE * (pos + neg)


def _vae_kernel(x_ref, eps_ref, b_ref, w_ref, xr_ref, mu_ref, sg_ref):
    """Layer order in the packed slab:
       0..3 enc1..enc4, 4 mu, 5 sigma, 6..9 dec1..dec4, 10 dec5."""

    def lin(h_bf16, layer):
        # bf16 MXU matmul, f32 accumulate, f32 bias (broadcast over batch rows).
        return (
            jnp.dot(h_bf16, w_ref[layer], preferred_element_type=jnp.float32)
            + b_ref[layer:layer + 1, :]
        )

    h = x_ref[...]                                      # (TB, D) bf16

    # ---- encoder ----
    for l in range(4):
        h = _selu(lin(h, l)).astype(jnp.bfloat16)

    # ---- mu / sigma heads (lane-dense: true values in lanes [0:E], zeros after) ----
    mu = lin(h, 4)                                      # (TB, D) f32
    sg = lin(h, 5)                                      # (TB, D) f32
    mu_ref[...] = mu
    sg_ref[...] = sg

    # ---- reparameterize: z = mu + sigma * epsilon (f32, lane-aligned) ----
    # eps is zero-padded beyond E in the wrapper; padded lanes of z stay 0 and
    # the corresponding dec1 weight rows are zero anyway.
    z = (mu + sg * eps_ref[...]).astype(jnp.bfloat16)

    # ---- decoder ----
    g = z
    for l in range(6, 10):
        g = _selu(lin(g, l)).astype(jnp.bfloat16)

    logits = lin(g, 10)
    # sigmoid via EUP (exp + approx reciprocal) -> keeps VPU slots free.
    xr_ref[...] = pl.reciprocal(1.0 + jnp.exp(-logits), approx=True)


def _round_up(n, m):
    return -(-n // m) * m


def _pick_batch_tile(batch, min_steps=4):
    """Largest tile <= 512 that still gives >= min_steps grid steps (so v7x's
    two TensorCores each get >= 2 pipelined steps); tiny batches fall back to 8
    and get padded up by the wrapper."""
    for tb in (512, 256, 128, 64, 32, 16, 8):
        if tb * min_steps <= batch:
            return tb
    return 8


def prepare_vae_params(params):
    """One-time packing (hoisted out of the forward path).

    params: list of (W[in, out], b[1, out]) for the 11 Linear layers in order
            enc1..enc4, mu_linear, sigma_linear, dec1..dec5.
    Returns (w_pack bf16 (11, D, D), b_pack f32 (11, D)) with zero padding, so
    padded lanes stay exactly zero through SELU and contribute nothing on the MXU.
    """
    D = _round_up(max(max(w.shape[0], w.shape[1]) for (w, _) in params), 128)
    w_pack = jnp.stack([
        jnp.pad(w.astype(jnp.bfloat16),
                ((0, D - w.shape[0]), (0, D - w.shape[1])))
        for (w, _) in params
    ])
    b_pack = jnp.stack([
        jnp.pad(b[0].astype(jnp.float32), (0, D - b.shape[1]))
        for (_, b) in params
    ])
    return w_pack, b_pack


def vae_forward(x, epsilon, prepared):
    """x: (B, inputsize) f32, epsilon: (B, E) f32, prepared = prepare_vae_params(params).
    Returns (x_reconstructed, mu, sigma) in f32, matching VAE.forward."""
    w_pack, b_pack = prepared
    D = w_pack.shape[1]
    B, inputsize = x.shape
    E = epsilon.shape[1]

    TB = _pick_batch_tile(B)
    Bp = _round_up(B, TB)
    grid = (Bp // TB,)

    # bf16 x at the HBM boundary; zero-pad features to slab width D and batch
    # rows to a multiple of TB (padding rows are sliced off below).
    xp = jnp.pad(x.astype(jnp.bfloat16), ((0, Bp - B), (0, D - inputsize)))
    # epsilon kept f32, lane-aligned with mu/sigma (lanes [0:E]).
    ep = jnp.pad(epsilon.astype(jnp.float32), ((0, Bp - B), (0, D - E)))

    in_specs = [
        pl.BlockSpec((TB, D), lambda i: (i, 0)),           # x tile (bf16)
        pl.BlockSpec((TB, D), lambda i: (i, 0)),           # epsilon tile (f32)
        pl.BlockSpec(b_pack.shape, lambda i: (0, 0)),      # packed biases (resident)
        pl.BlockSpec(w_pack.shape, lambda i: (0, 0, 0)),   # packed weights (resident)
    ]
    out_specs = (
        pl.BlockSpec((TB, D), lambda i: (i, 0)),           # x_reconstructed
        pl.BlockSpec((TB, D), lambda i: (i, 0)),           # mu (lane-dense, padded)
        pl.BlockSpec((TB, D), lambda i: (i, 0)),           # sigma (lane-dense, padded)
    )
    out_shapes = (
        jax.ShapeDtypeStruct((Bp, D), jnp.float32),
        jax.ShapeDtypeStruct((Bp, D), jnp.float32),
        jax.ShapeDtypeStruct((Bp, D), jnp.float32),
    )

    # Advisory cost estimate so XLA schedules around the custom call.
    flops = 2 * Bp * 11 * D * D
    transcendentals = Bp * D * 10                  # 8x SELU exp + sigmoid exp + rcp
    bytes_accessed = (
        xp.size * 2 + ep.size * 4
        + w_pack.size * 2 + b_pack.size * 4
        + 3 * Bp * D * 4
    )

    xr, mu, sg = pl.pallas_call(
        _vae_kernel,
        out_shape=out_shapes,
        grid_spec=pltpu.PrefetchScalarGridSpec(
            num_scalar_prefetch=0,
            grid=grid,
            in_specs=in_specs,
            out_specs=out_specs,
        ),
        compiler_params=pltpu.CompilerParams(
            dimension_semantics=("parallel",),
        ),
        cost_estimate=pl.CostEstimate(
            flops=flops,
            transcendentals=transcendentals,
            bytes_accessed=bytes_accessed,
        ),
    )(xp, ep, b_pack, w_pack)

    return xr[:B, :inputsize], mu[:B, :E], sg[:B, :E]


def init_vae_params(key, inputsize, embedding_size):
    """Deterministic init mirroring nn.Linear default (U[-1/sqrt(fan_in), +1/sqrt(fan_in)]).
    Weights are stored as [in, out] (transpose of PyTorch layout)."""
    h = inputsize
    dims = []
    for _ in range(4):
        h = h // 2
        dims.append(h)

    layer_io = [
        (inputsize, dims[0]),        # enc1
        (dims[0], dims[1]),          # enc2
        (dims[1], dims[2]),          # enc3
        (dims[2], dims[3]),          # enc4
        (dims[3], embedding_size),   # mu_linear
        (dims[3], embedding_size),   # sigma_linear
        (embedding_size, dims[3]),   # dec1
        (dims[3], dims[2]),          # dec2
        (dims[2], dims[1]),          # dec3
        (dims[1], dims[0]),          # dec4
        (dims[0], inputsize),        # dec5
    ]

    params = []
    for (fan_in, fan_out) in layer_io:
        key, kw, kb = jax.random.split(key, 3)
        bound = 1.0 / jnp.sqrt(jnp.float32(fan_in))
        w = jax.random.uniform(
            kw, (fan_in, fan_out), jnp.float32, minval=-bound, maxval=bound
        )
        b = jax.random.uniform(
            kb, (1, fan_out), jnp.float32, minval=-bound, maxval=bound
        )
        params.append((w, b))
    return params


def vae_forward_ref(x, epsilon, params):
    """Pure-JAX reference matching the kernel's bf16-matmul / f32-accumulate path."""
    def lin(h, p):
        return (
            jnp.dot(h.astype(jnp.bfloat16), p[0].astype(jnp.bfloat16),
                    preferred_element_type=jnp.float32)
            + p[1]
        )

    h = x
    for i in range(4):
        h = jax.nn.selu(lin(h, params[i]))
    mu = lin(h, params[4])
    sigma = lin(h, params[5])
    z = mu + sigma * epsilon
    g = z
    for i in range(6, 10):
        g = jax.nn.selu(lin(g, params[i]))
    x_rec = jax.nn.sigmoid(lin(g, params[10]))
    return x_rec, mu, sigma


if __name__ == "__main__":
    inputsize = 128
    embedding_size = 16
    batch = 256          # -> TB=64, 4 pipelined grid steps (2 per TC on v7x)

    key = jax.random.PRNGKey(0)
    kx, keps, kparams = jax.random.split(key, 3)

    x = jax.random.normal(kx, (batch, inputsize), jnp.float32)
    # torch.randn_like(sigma) -> deterministic normal noise passed in as input.
    epsilon = jax.random.normal(keps, (batch, embedding_size), jnp.float32)

    params = init_vae_params(kparams, inputsize, embedding_size)
    prepared = prepare_vae_params(params)       # one-time packing (hoisted)

    fwd = jax.jit(vae_forward)
    x_rec, mu, sigma = fwd(x, epsilon, prepared)
    jax.block_until_ready((x_rec, mu, sigma))

    # sanity check against a bf16-matched pure-JAX reference
    xr_ref, mu_ref, sg_ref = vae_forward_ref(x, epsilon, params)
    assert jnp.allclose(mu, mu_ref, atol=2e-2, rtol=2e-2)
    assert jnp.allclose(sigma, sg_ref, atol=2e-2, rtol=2e-2)
    assert jnp.allclose(x_rec, xr_ref, atol=2e-2, rtol=2e-2)

    print("KERNEL_OK")
</pallas_src>

<mosaic_0001>
module attributes {stable_mosaic.version = 11 : i64} {
  func.func @_vae_kernel(%arg0: i32, %arg1: memref<64x128xbf16, #tpu.memory_space<vmem>>, %arg2: memref<64x128xf32, #tpu.memory_space<vmem>>, %arg3: memref<11x128xf32, #tpu.memory_space<vmem>>, %arg4: memref<11x128x128xbf16, #tpu.memory_space<vmem>>, %arg5: memref<64x128xf32, #tpu.memory_space<vmem>>, %arg6: memref<64x128xf32, #tpu.memory_space<vmem>>, %arg7: memref<64x128xf32, #tpu.memory_space<vmem>>) attributes {dimension_semantics = [#tpu.dimension_semantics<parallel>], iteration_bounds = array<i64: 4>, scalar_prefetch = 0 : i64, scratch_operands = 0 : i64, tpu.core_type = #tpu.core_type<tc>, window_params = [{transform_indices = @transform_0, window_bounds = array<i64: 64, 128>}, {transform_indices = @transform_1, window_bounds = array<i64: 64, 128>}, {pipeline_mode = #tpu.pipeline_mode<synchronous>, transform_indices = @transform_2, window_bounds = array<i64: 11, 128>}, {pipeline_mode = #tpu.pipeline_mode<synchronous>, transform_indices = @transform_3, window_bounds = array<i64: 11, 128, 128>}, {transform_indices = @transform_4, window_bounds = array<i64: 64, 128>}, {transform_indices = @transform_5, window_bounds = array<i64: 64, 128>}, {transform_indices = @transform_6, window_bounds = array<i64: 64, 128>}]} {
    %c0 = arith.constant 0 : index
    %c0_0 = arith.constant 0 : index
    %0 = vector.load %arg1[%c0, %c0_0] : memref<64x128xbf16, #tpu.memory_space<vmem>>, vector<64x128xbf16>
    %c0_1 = arith.constant 0 : index
    %c0_2 = arith.constant 0 : index
    %c0_3 = arith.constant 0 : index
    %1 = vector.load %arg4[%c0_1, %c0_2, %c0_3] : memref<11x128x128xbf16, #tpu.memory_space<vmem>>, vector<1x128x128xbf16>
    %2 = vector.shape_cast %1 : vector<1x128x128xbf16> to vector<128x128xbf16>
    %cst = arith.constant dense<0.000000e+00> : vector<64x128xf32>
    %3 = tpu.matmul %0, %2, %cst {dimension_numbers = #tpu.dot_dimension_numbers<[1], [0], [0], [1], [0, 0, 1, 1], [], []>} : vector<64x128xbf16>, vector<128x128xbf16>, vector<64x128xf32> -> vector<64x128xf32>
    %c0_4 = arith.constant 0 : index
    %c0_5 = arith.constant 0 : index
    %4 = vector.load %arg3[%c0_4, %c0_5] : memref<11x128xf32, #tpu.memory_space<vmem>>, vector<1x128xf32>
    %5 = vector.broadcast %4 : vector<1x128xf32> to vector<64x128xf32>
    %6 = arith.addf %3, %5 : vector<64x128xf32>
    %cst_6 = arith.constant 0.000000e+00 : f32
    %7 = vector.broadcast %cst_6 : f32 to vector<64x128xf32>
    %8 = arith.maximumf %6, %7 : vector<64x128xf32>
    %cst_7 = arith.constant 0.000000e+00 : f32
    %9 = vector.broadcast %cst_7 : f32 to vector<64x128xf32>
    %10 = arith.minimumf %6, %9 : vector<64x128xf32>
    %11 = math.exp %10 : vector<64x128xf32>
    %cst_8 = arith.constant 1.000000e+00 : f32
    %12 = vector.broadcast %cst_8 : f32 to vector<64x128xf32>
    %13 = arith.subf %11, %12 : vector<64x128xf32>
    %cst_9 = arith.constant 1.67326319 : f32
    %14 = vector.broadcast %cst_9 : f32 to vector<64x128xf32>
    %15 = arith.mulf %14, %13 : vector<64x128xf32>
    %16 = arith.addf %8, %15 : vector<64x128xf32>
    %cst_10 = arith.constant 1.05070102 : f32
    %17 = vector.broadcast %cst_10 : f32 to vector<64x128xf32>
    %18 = arith.mulf %17, %16 : vector<64x128xf32>
    %19 = arith.truncf %18 : vector<64x128xf32> to vector<64x128xbf16>
    %c1 = arith.constant 1 : index
    %c0_11 = arith.constant 0 : index
    %c0_12 = arith.constant 0 : index
    %20 = vector.load %arg4[%c1, %c0_11, %c0_12] : memref<11x128x128xbf16, #tpu.memory_space<vmem>>, vector<1x128x128xbf16>
    %21 = vector.shape_cast %20 : vector<1x128x128xbf16> to vector<128x128xbf16>
    %cst_13 = arith.constant dense<0.000000e+00> : vector<64x128xf32>
    %22 = tpu.matmul %19, %21, %cst_13 {dimension_numbers = #tpu.dot_dimension_numbers<[1], [0], [0], [1], [0, 0, 1, 1], [], []>} : vector<64x128xbf16>, vector<128x128xbf16>, vector<64x128xf32> -> vector<64x128xf32>
    %c1_14 = arith.constant 1 : index
    %c0_15 = arith.constant 0 : index
    %23 = vector.load %arg3[%c1_14, %c0_15] : memref<11x128xf32, #tpu.memory_space<vmem>>, vector<1x128xf32>
    %24 = vector.broadcast %23 : vector<1x128xf32> to vector<64x128xf32>
    %25 = arith.addf %22, %24 : vector<64x128xf32>
    %cst_16 = arith.constant 0.000000e+00 : f32
    %26 = vector.broadcast %cst_16 : f32 to vector<64x128xf32>
    %27 = arith.maximumf %25, %26 : vector<64x128xf32>
    %cst_17 = arith.constant 0.000000e+00 : f32
    %28 = vector.broadcast %cst_17 : f32 to vector<64x128xf32>
    %29 = arith.minimumf %25, %28 : vector<64x128xf32>
    %30 = math.exp %29 : vector<64x128xf32>
    %cst_18 = arith.constant 1.000000e+00 : f32
    %31 = vector.broadcast %cst_18 : f32 to vector<64x128xf32>
    %32 = arith.subf %30, %31 : vector<64x128xf32>
    %cst_19 = arith.constant 1.67326319 : f32
    %33 = vector.broadcast %cst_19 : f32 to vector<64x128xf32>
    %34 = arith.mulf %33, %32 : vector<64x128xf32>
    %35 = arith.addf %27, %34 : vector<64x128xf32>
    %cst_20 = arith.constant 1.05070102 : f32
    %36 = vector.broadcast %cst_20 : f32 to vector<64x128xf32>
    %37 = arith.mulf %36, %35 : vector<64x128xf32>
    %38 = arith.truncf %37 : vector<64x128xf32> to vector<64x128xbf16>
    %c2 = arith.constant 2 : index
    %c0_21 = arith.constant 0 : index
    %c0_22 = arith.constant 0 : index
    %39 = vector.load %arg4[%c2, %c0_21, %c0_22] : memref<11x128x128xbf16, #tpu.memory_space<vmem>>, vector<1x128x128xbf16>
    %40 = vector.shape_cast %39 : vector<1x128x128xbf16> to vector<128x128xbf16>
    %cst_23 = arith.constant dense<0.000000e+00> : vector<64x128xf32>
    %41 = tpu.matmul %38, %40, %cst_23 {dimension_numbers = #tpu.dot_dimension_numbers<[1], [0], [0], [1], [0, 0, 1, 1], [], []>} : vector<64x128xbf16>, vector<128x128xbf16>, vector<64x128xf32> -> vector<64x128xf32>
    %c2_24 = arith.constant 2 : index
    %c0_25 = arith.constant 0 : index
    %42 = vector.load %arg3[%c2_24, %c0_25] : memref<11x128xf32, #tpu.memory_space<vmem>>, vector<1x128xf32>
    %43 = vector.broadcast %42 : vector<1x128xf32> to vector<64x128xf32>
    %44 = arith.addf %41, %43 : vector<64x128xf32>
    %cst_26 = arith.constant 0.000000e+00 : f32
    %45 = vector.broadcast %cst_26 : f32 to vector<64x128xf32>
    %46 = arith.maximumf %44, %45 : vector<64x128xf32>
    %cst_27 = arith.constant 0.000000e+00 : f32
    %47 = vector.broadcast %cst_27 : f32 to vector<64x128xf32>
    %48 = arith.minimumf %44, %47 : vector<64x128xf32>
    %49 = math.exp %48 : vector<64x128xf32>
    %cst_28 = arith.constant 1.000000e+00 : f32
    %50 = vector.broadcast %cst_28 : f32 to vector<64x128xf32>
    %51 = arith.subf %49, %50 : vector<64x128xf32>
    %cst_29 = arith.constant 1.67326319 : f32
    %52 = vector.broadcast %cst_29 : f32 to vector<64x128xf32>
    %53 = arith.mulf %52, %51 : vector<64x128xf32>
    %54 = arith.addf %46, %53 : vector<64x128xf32>
    %cst_30 = arith.constant 1.05070102 : f32
    %55 = vector.broadcast %cst_30 : f32 to vector<64x128xf32>
    %56 = arith.mulf %55, %54 : vector<64x128xf32>
    %57 = arith.truncf %56 : vector<64x128xf32> to vector<64x128xbf16>
    %c3 = arith.constant 3 : index
    %c0_31 = arith.constant 0 : index
    %c0_32 = arith.constant 0 : index
    %58 = vector.load %arg4[%c3, %c0_31, %c0_32] : memref<11x128x128xbf16, #tpu.memory_space<vmem>>, vector<1x128x128xbf16>
    %59 = vector.shape_cast %58 : vector<1x128x128xbf16> to vector<128x128xbf16>
    %cst_33 = arith.constant dense<0.000000e+00> : vector<64x128xf32>
    %60 = tpu.matmul %57, %59, %cst_33 {dimension_numbers = #tpu.dot_dimension_numbers<[1], [0], [0], [1], [0, 0, 1, 1], [], []>} : vector<64x128xbf16>, vector<128x128xbf16>, vector<64x128xf32> -> vector<64x128xf32>
    %c3_34 = arith.constant 3 : index
    %c0_35 = arith.constant 0 : index
    %61 = vector.load %arg3[%c3_34, %c0_35] : memref<11x128xf32, #tpu.memory_space<vmem>>, vector<1x128xf32>
    %62 = vector.broadcast %61 : vector<1x128xf32> to vector<64x128xf32>
    %63 = arith.addf %60, %62 : vector<64x128xf32>
    %cst_36 = arith.constant 0.000000e+00 : f32
    %64 = vector.broadcast %cst_36 : f32 to vector<64x128xf32>
    %65 = arith.maximumf %63, %64 : vector<64x128xf32>
    %cst_37 = arith.constant 0.000000e+00 : f32
    %66 = vector.broadcast %cst_37 : f32 to vector<64x128xf32>
    %67 = arith.minimumf %63, %66 : vector<64x128xf32>
    %68 = math.exp %67 : vector<64x128xf32>
    %cst_38 = arith.constant 1.000000e+00 : f32
    %69 = vector.broadcast %cst_38 : f32 to vector<64x128xf32>
    %70 = arith.subf %68, %69 : vector<64x128xf32>
    %cst_39 = arith.constant 1.67326319 : f32
    %71 = vector.broadcast %cst_39 : f32 to vector<64x128xf32>
    %72 = arith.mulf %71, %70 : vector<64x128xf32>
    %73 = arith.addf %65, %72 : vector<64x128xf32>
    %cst_40 = arith.constant 1.05070102 : f32
    %74 = vector.broadcast %cst_40 : f32 to vector<64x128xf32>
    %75 = arith.mulf %74, %73 : vector<64x128xf32>
    %76 = arith.truncf %75 : vector<64x128xf32> to vector<64x128xbf16>
    %c4 = arith.constant 4 : index
    %c0_41 = arith.constant 0 : index
    %c0_42 = arith.constant 0 : index
    %77 = vector.load %arg4[%c4, %c0_41, %c0_42] : memref<11x128x128xbf16, #tpu.memory_space<vmem>>, vector<1x128x128xbf16>
    %78 = vector.shape_cast %77 : vector<1x128x128xbf16> to vector<128x128xbf16>
    %cst_43 = arith.constant dense<0.000000e+00> : vector<64x128xf32>
    %79 = tpu.matmul %76, %78, %cst_43 {dimension_numbers = #tpu.dot_dimension_numbers<[1], [0], [0], [1], [0, 0, 1, 1], [], []>} : vector<64x128xbf16>, vector<128x128xbf16>, vector<64x128xf32> -> vector<64x128xf32>
    %c4_44 = arith.constant 4 : index
    %c0_45 = arith.constant 0 : index
    %80 = vector.load %arg3[%c4_44, %c0_45] : memref<11x128xf32, #tpu.memory_space<vmem>>, vector<1x128xf32>
    %81 = vector.broadcast %80 : vector<1x128xf32> to vector<64x128xf32>
    %82 = arith.addf %79, %81 : vector<64x128xf32>
    %c5 = arith.constant 5 : index
    %c0_46 = arith.constant 0 : index
    %c0_47 = arith.constant 0 : index
    %83 = vector.load %arg4[%c5, %c0_46, %c0_47] : memref<11x128x128xbf16, #tpu.memory_space<vmem>>, vector<1x128x128xbf16>
    %84 = vector.shape_cast %83 : vector<1x128x128xbf16> to vector<128x128xbf16>
    %cst_48 = arith.constant dense<0.000000e+00> : vector<64x128xf32>
    %85 = tpu.matmul %76, %84, %cst_48 {dimension_numbers = #tpu.dot_dimension_numbers<[1], [0], [0], [1], [0, 0, 1, 1], [], []>} : vector<64x128xbf16>, vector<128x128xbf16>, vector<64x128xf32> -> vector<64x128xf32>
    %c5_49 = arith.constant 5 : index
    %c0_50 = arith.constant 0 : index
    %86 = vector.load %arg3[%c5_49, %c0_50] : memref<11x128xf32, #tpu.memory_space<vmem>>, vector<1x128xf32>
    %87 = vector.broadcast %86 : vector<1x128xf32> to vector<64x128xf32>
    %88 = arith.addf %85, %87 : vector<64x128xf32>
    %c0_51 = arith.constant 0 : index
    %c0_52 = arith.constant 0 : index
    %89 = vector.load %arg6[%c0_51, %c0_52] : memref<64x128xf32, #tpu.memory_space<vmem>>, vector<64x128xf32>
    tpu.vector_store %arg6[%c0_51, %c0_52], %82 {strides = array<i32>} : memref<64x128xf32, #tpu.memory_space<vmem>>, vector<64x128xf32>,
    %c0_53 = arith.constant 0 : index
    %c0_54 = arith.constant 0 : index
    %90 = vector.load %arg7[%c0_53, %c0_54] : memref<64x128xf32, #tpu.memory_space<vmem>>, vector<64x128xf32>
    tpu.vector_store %arg7[%c0_53, %c0_54], %88 {strides = array<i32>} : memref<64x128xf32, #tpu.memory_space<vmem>>, vector<64x128xf32>,
    %c0_55 = arith.constant 0 : index
    %c0_56 = arith.constant 0 : index
    %91 = vector.load %arg2[%c0_55, %c0_56] : memref<64x128xf32, #tpu.memory_space<vmem>>, vector<64x128xf32>
    %92 = arith.mulf %88, %91 : vector<64x128xf32>
    %93 = arith.addf %82, %92 : vector<64x128xf32>
    %94 = arith.truncf %93 : vector<64x128xf32> to vector<64x128xbf16>
    %c6 = arith.constant 6 : index
    %c0_57 = arith.constant 0 : index
    %c0_58 = arith.constant 0 : index
    %95 = vector.load %arg4[%c6, %c0_57, %c0_58] : memref<11x128x128xbf16, #tpu.memory_space<vmem>>, vector<1x128x128xbf16>
    %96 = vector.shape_cast %95 : vector<1x128x128xbf16> to vector<128x128xbf16>
    %cst_59 = arith.constant dense<0.000000e+00> : vector<64x128xf32>
    %97 = tpu.matmul %94, %96, %cst_59 {dimension_numbers = #tpu.dot_dimension_numbers<[1], [0], [0], [1], [0, 0, 1, 1], [], []>} : vector<64x128xbf16>, vector<128x128xbf16>, vector<64x128xf32> -> vector<64x128xf32>
    %c6_60 = arith.constant 6 : index
    %c0_61 = arith.constant 0 : index
    %98 = vector.load %arg3[%c6_60, %c0_61] : memref<11x128xf32, #tpu.memory_space<vmem>>, vector<1x128xf32>
    %99 = vector.broadcast %98 : vector<1x128xf32> to vector<64x128xf32>
    %100 = arith.addf %97, %99 : vector<64x128xf32>
    %cst_62 = arith.constant 0.000000e+00 : f32
    %101 = vector.broadcast %cst_62 : f32 to vector<64x128xf32>
    %102 = arith.maximumf %100, %101 : vector<64x128xf32>
    %cst_63 = arith.constant 0.000000e+00 : f32
    %103 = vector.broadcast %cst_63 : f32 to vector<64x128xf32>
    %104 = arith.minimumf %100, %103 : vector<64x128xf32>
    %105 = math.exp %104 : vector<64x128xf32>
    %cst_64 = arith.constant 1.000000e+00 : f32
    %106 = vector.broadcast %cst_64 : f32 to vector<64x128xf32>
    %107 = arith.subf %105, %106 : vector<64x128xf32>
    %cst_65 = arith.constant 1.67326319 : f32
    %108 = vector.broadcast %cst_65 : f32 to vector<64x128xf32>
    %109 = arith.mulf %108, %107 : vector<64x128xf32>
    %110 = arith.addf %102, %109 : vector<64x128xf32>
    %cst_66 = arith.constant 1.05070102 : f32
    %111 = vector.broadcast %cst_66 : f32 to vector<64x128xf32>
    %112 = arith.mulf %111, %110 : vector<64x128xf32>
    %113 = arith.truncf %112 : vector<64x128xf32> to vector<64x128xbf16>
    %c7 = arith.constant 7 : index
    %c0_67 = arith.constant 0 : index
    %c0_68 = arith.constant 0 : index
    %114 = vector.load %arg4[%c7, %c0_67, %c0_68] : memref<11x128x128xbf16, #tpu.memory_space<vmem>>, vector<1x128x128xbf16>
    %115 = vector.shape_cast %114 : vector<1x128x128xbf16> to vector<128x128xbf16>
    %cst_69 = arith.constant dense<0.000000e+00> : vector<64x128xf32>
    %116 = tpu.matmul %113, %115, %cst_69 {dimension_numbers = #tpu.dot_dimension_numbers<[1], [0], [0], [1], [0, 0, 1, 1], [], []>} : vector<64x128xbf16>, vector<128x128xbf16>, vector<64x128xf32> -> vector<64x128xf32>
    %c7_70 = arith.constant 7 : index
    %c0_71 = arith.constant 0 : index
    %117 = vector.load %arg3[%c7_70, %c0_71] : memref<11x128xf32, #tpu.memory_space<vmem>>, vector<1x128xf32>
    %118 = vector.broadcast %117 : vector<1x128xf32> to vector<64x128xf32>
    %119 = arith.addf %116, %118 : vector<64x128xf32>
    %cst_72 = arith.constant 0.000000e+00 : f32
    %120 = vector.broadcast %cst_72 : f32 to vector<64x128xf32>
    %121 = arith.maximumf %119, %120 : vector<64x128xf32>
    %cst_73 = arith.constant 0.000000e+00 : f32
    %122 = vector.broadcast %cst_73 : f32 to vector<64x128xf32>
    %123 = arith.minimumf %119, %122 : vector<64x128xf32>
    %124 = math.exp %123 : vector<64x128xf32>
    %cst_74 = arith.constant 1.000000e+00 : f32
    %125 = vector.broadcast %cst_74 : f32 to vector<64x128xf32>
    %126 = arith.subf %124, %125 : vector<64x128xf32>
    %cst_75 = arith.constant 1.67326319 : f32
    %127 = vector.broadcast %cst_75 : f32 to vector<64x128xf32>
    %128 = arith.mulf %127, %126 : vector<64x128xf32>
    %129 = arith.addf %121, %128 : vector<64x128xf32>
    %cst_76 = arith.constant 1.05070102 : f32
    %130 = vector.broadcast %cst_76 : f32 to vector<64x128xf32>
    %131 = arith.mulf %130, %129 : vector<64x128xf32>
    %132 = arith.truncf %131 : vector<64x128xf32> to vector<64x128xbf16>
    %c8 = arith.constant 8 : index
    %c0_77 = arith.constant 0 : index
    %c0_78 = arith.constant 0 : index
    %133 = vector.load %arg4[%c8, %c0_77, %c0_78] : memref<11x128x128xbf16, #tpu.memory_space<vmem>>, vector<1x128x128xbf16>
    %134 = vector.shape_cast %133 : vector<1x128x128xbf16> to vector<128x128xbf16>
    %cst_79 = arith.constant dense<0.000000e+00> : vector<64x128xf32>
    %135 = tpu.matmul %132, %134, %cst_79 {dimension_numbers = #tpu.dot_dimension_numbers<[1], [0], [0], [1], [0, 0, 1, 1], [], []>} : vector<64x128xbf16>, vector<128x128xbf16>, vector<64x128xf32> -> vector<64x128xf32>
    %c8_80 = arith.constant 8 : index
    %c0_81 = arith.constant 0 : index
    %136 = vector.load %arg3[%c8_80, %c0_81] : memref<11x128xf32, #tpu.memory_space<vmem>>, vector<1x128xf32>
    %137 = vector.broadcast %136 : vector<1x128xf32> to vector<64x128xf32>
    %138 = arith.addf %135, %137 : vector<64x128xf32>
    %cst_82 = arith.constant 0.000000e+00 : f32
    %139 = vector.broadcast %cst_82 : f32 to vector<64x128xf32>
    %140 = arith.maximumf %138, %139 : vector<64x128xf32>
    %cst_83 = arith.constant 0.000000e+00 : f32
    %141 = vector.broadcast %cst_83 : f32 to vector<64x128xf32>
    %142 = arith.minimumf %138, %141 : vector<64x128xf32>
    %143 = math.exp %142 : vector<64x128xf32>
    %cst_84 = arith.constant 1.000000e+00 : f32
    %144 = vector.broadcast %cst_84 : f32 to vector<64x128xf32>
    %145 = arith.subf %143, %144 : vector<64x128xf32>
    %cst_85 = arith.constant 1.67326319 : f32
    %146 = vector.broadcast %cst_85 : f32 to vector<64x128xf32>
    %147 = arith.mulf %146, %145 : vector<64x128xf32>
    %148 = arith.addf %140, %147 : vector<64x128xf32>
    %cst_86 = arith.constant 1.05070102 : f32
    %149 = vector.broadcast %cst_86 : f32 to vector<64x128xf32>
    %150 = arith.mulf %149, %148 : vector<64x128xf32>
    %151 = arith.truncf %150 : vector<64x128xf32> to vector<64x128xbf16>
    %c9 = arith.constant 9 : index
    %c0_87 = arith.constant 0 : index
    %c0_88 = arith.constant 0 : index
    %152 = vector.load %arg4[%c9, %c0_87, %c0_88] : memref<11x128x128xbf16, #tpu.memory_space<vmem>>, vector<1x128x128xbf16>
    %153 = vector.shape_cast %152 : vector<1x128x128xbf16> to vector<128x128xbf16>
    %cst_89 = arith.constant dense<0.000000e+00> : vector<64x128xf32>
    %154 = tpu.matmul %151, %153, %cst_89 {dimension_numbers = #tpu.dot_dimension_numbers<[1], [0], [0], [1], [0, 0, 1, 1], [], []>} : vector<64x128xbf16>, vector<128x128xbf16>, vector<64x128xf32> -> vector<64x128xf32>
    %c9_90 = arith.constant 9 : index
    %c0_91 = arith.constant 0 : index
    %155 = vector.load %arg3[%c9_90, %c0_91] : memref<11x128xf32, #tpu.memory_space<vmem>>, vector<1x128xf32>
    %156 = vector.broadcast %155 : vector<1x128xf32> to vector<64x128xf32>
    %157 = arith.addf %154, %156 : vector<64x128xf32>
    %cst_92 = arith.constant 0.000000e+00 : f32
    %158 = vector.broadcast %cst_92 : f32 to vector<64x128xf32>
    %159 = arith.maximumf %157, %158 : vector<64x128xf32>
    %cst_93 = arith.constant 0.000000e+00 : f32
    %160 = vector.broadcast %cst_93 : f32 to vector<64x128xf32>
    %161 = arith.minimumf %157, %160 : vector<64x128xf32>
    %162 = math.exp %161 : vector<64x128xf32>
    %cst_94 = arith.constant 1.000000e+00 : f32
    %163 = vector.broadcast %cst_94 : f32 to vector<64x128xf32>
    %164 = arith.subf %162, %163 : vector<64x128xf32>
    %cst_95 = arith.constant 1.67326319 : f32
    %165 = vector.broadcast %cst_95 : f32 to vector<64x128xf32>
    %166 = arith.mulf %165, %164 : vector<64x128xf32>
    %167 = arith.addf %159, %166 : vector<64x128xf32>
    %cst_96 = arith.constant 1.05070102 : f32
    %168 = vector.broadcast %cst_96 : f32 to vector<64x128xf32>
    %169 = arith.mulf %168, %167 : vector<64x128xf32>
    %170 = arith.truncf %169 : vector<64x128xf32> to vector<64x128xbf16>
    %c10 = arith.constant 10 : index
    %c0_97 = arith.constant 0 : index
    %c0_98 = arith.constant 0 : index
    %171 = vector.load %arg4[%c10, %c0_97, %c0_98] : memref<11x128x128xbf16, #tpu.memory_space<vmem>>, vector<1x128x128xbf16>
    %172 = vector.shape_cast %171 : vector<1x128x128xbf16> to vector<128x128xbf16>
    %cst_99 = arith.constant dense<0.000000e+00> : vector<64x128xf32>
    %173 = tpu.matmul %170, %172, %cst_99 {dimension_numbers = #tpu.dot_dimension_numbers<[1], [0], [0], [1], [0, 0, 1, 1], [], []>} : vector<64x128xbf16>, vector<128x128xbf16>, vector<64x128xf32> -> vector<64x128xf32>
    %c10_100 = arith.constant 10 : index
    %c0_101 = arith.constant 0 : index
    %174 = vector.load %arg3[%c10_100, %c0_101] : memref<11x128xf32, #tpu.memory_space<vmem>>, vector<1x128xf32>
    %175 = vector.broadcast %174 : vector<1x128xf32> to vector<64x128xf32>
    %176 = arith.addf %173, %175 : vector<64x128xf32>
    %cst_102 = arith.constant 0.000000e+00 : f32
    %177 = vector.broadcast %cst_102 : f32 to vector<64x128xf32>
    %178 = arith.subf %177, %176 : vector<64x128xf32>
    %179 = math.exp %178 : vector<64x128xf32>
    %cst_103 = arith.constant 1.000000e+00 : f32
    %180 = vector.broadcast %cst_103 : f32 to vector<64x128xf32>
    %181 = arith.addf %180, %179 : vector<64x128xf32>
    %182 = tpu.reciprocal %181 {approx = true} : vector<64x128xf32> -> vector<64x128xf32>
    %c0_104 = arith.constant 0 : index
    %c0_105 = arith.constant 0 : index
    %183 = vector.load %arg5[%c0_104, %c0_105] : memref<64x128xf32, #tpu.memory_space<vmem>>, vector<64x128xf32>
    tpu.vector_store %arg5[%c0_104, %c0_105], %182 {strides = array<i32>} : memref<64x128xf32, #tpu.memory_space<vmem>>, vector<64x128xf32>,
    return
  }
  func.func @transform_0(%arg0: i32) -> (i32, i32) {
    %c0_i32 = arith.constant 0 : i32
    %c0_i32_0 = arith.constant 0 : i32
    return %arg0, %c0_i32 : i32, i32
  }
  func.func @transform_1(%arg0: i32) -> (i32, i32) {
    %c0_i32 = arith.constant 0 : i32
    %c0_i32_0 = arith.constant 0 : i32
    return %arg0, %c0_i32 : i32, i32
  }
  func.func @transform_2(%arg0: i32) -> (i32, i32) {
    %c0_i32 = arith.constant 0 : i32
    %c0_i32_0 = arith.constant 0 : i32
    %c0_i32_1 = arith.constant 0 : i32
    return %c0_i32, %c0_i32_0 : i32, i32
  }
  func.func @transform_3(%arg0: i32) -> (i32, i32, i32) {
    %c0_i32 = arith.constant 0 : i32
    %c0_i32_0 = arith.constant 0 : i32
    %c0_i32_1 = arith.constant 0 : i32
    %c0_i32_2 = arith.constant 0 : i32
    return %c0_i32, %c0_i32_0, %c0_i32_1 : i32, i32, i32
  }
  func.func @transform_4(%arg0: i32) -> (i32, i32) {
    %c0_i32 = arith.constant 0 : i32
    %c0_i32_0 = arith.constant 0 : i32
    return %arg0, %c0_i32 : i32, i32
  }
  func.func @transform_5(%arg0: i32) -> (i32, i32) {
    %c0_i32 = arith.constant 0 : i32
    %c0_i32_0 = arith.constant 0 : i32
    return %arg0, %c0_i32 : i32, i32
  }
  func.func @transform_6(%arg0: i32) -> (i32, i32) {
    %c0_i32 = arith.constant 0 : i32
    %c0_i32_0 = arith.constant 0 : i32
    return %arg0, %c0_i32 : i32, i32
  }
}

</mosaic_0001>

<llo_original>
// kernel: vae_forward.1
$region0: #{vae_forward.1}
  #allocation0 [shape = 'u32[]', space=smem, size = 0x4, offset = 0x4, fixed_abs, tag = 'smem constant byte address 0x4 - core index']
  #allocation1 [shape = 'u32[144,128]{1,0:T(1,128)}', space=vmem, size = 0x12000, scoped, tag = 'internal scratch']
  %s0 = inlined_call_operand.vmem [shape: bf16[256,128], index: 0, kind: input, shape index: {}]
  %s1 = inlined_call_operand.vmem [shape: f32[256,128], index: 1, kind: input, shape index: {}]
  %s2 = inlined_call_operand.vmem [shape: f32[11,128], index: 2, kind: input, shape index: {}]
  %s3 = inlined_call_operand.vmem [shape: bf16[11,128,128], index: 3, kind: input, shape index: {}]
  %s4 = inlined_call_operand.hbm [shape: f32[256,128], index: 4, kind: output, shape index: {0}]
  %s5 = inlined_call_operand.vmem [shape: f32[256,128], index: 5, kind: output, shape index: {1}]
  %s6 = inlined_call_operand.vmem [shape: f32[256,128], index: 6, kind: output, shape index: {2}]
  %7 = xla_tuple %s4, %s5, %s6
  %s8 = sld [smem:[#allocation0]]
  $region65: #{vae_forward.1} parent=0
    _
  %s10 = ssub.s32 1, %s8
  %s11 = scalar_select 0, %s10, %s8
  $region1: #{vae_forward.1} parent=0
    #allocation2 [shape = 'u8[65536]{0}', space=vmem, size = 0x10000, scoped, tag = 'output window, operand 0']
    #allocation3 [shape = 's32[2]{0}', space=sflag, size = 0x8, scoped, tag = 'scoped memory for vae_forward.1']
    %12 = vsyncpa [#allocation3], 0
    %s13 = scalar_lea.sflag [#allocation3], 1
    %14 = vsyncpa %s13, 0
    loop: start=0, step=1, limit=6
    $region2: #{vae_forward.1} parent=1 // loop_pre_header
      _
    $region3: #{vae_forward.1} parent=1 // loop_header
      %s16 = sphi 0, %s20
      %p17 = scmp.ge.s32.totalorder %s16, 6
      %s26 = sphi 0, %s28
      %s29 = sphi 0, %s26
      %s30 = sphi 0, %s29
      %s46 = sphi 0, %s30
      %s52 = sphi 0, %s54
      %s55 = sphi 0, %s52
      %s56 = sphi 0, %s55
      %s72 = sphi 0, %s56
      %s76 = sphi 0, %s76
      %s78 = sphi 0, %s76
      %s79 = sphi 0, %s78
      %s93 = sphi 0, %s79
      %s97 = sphi 0, %s97
      %s99 = sphi 0, %s97
      %s100 = sphi 0, %s99
      %s114 = sphi 0, %s100
      %s120 = sphi 0, %s122
      %s123 = sphi 0, %s120
      %s124 = sphi 0, %s123
      %s140 = sphi 0, %s124
      %s146 = sphi 0, %s148
      %s149 = sphi 0, %s146
      %s150 = sphi 0, %s149
      %s166 = sphi 0, %s150
      %s172 = sphi 0, %s174
      %s175 = sphi 0, %s172
      %s176 = sphi 0, %s175
      %s192 = sphi 0, %s176
    $region4: #{vae_forward.1} parent=1 // loop_header_branch
      %19 = sbr.rel (%p17) target = $region8
    $region5: #{vae_forward.1} parent=1 // loop_body
      %s21 = ssub.s32 %s16, 1
      %s22 = ssub.s32 %s16, 2
      %s23 = sadd.s32 %s16, 1
      %s24 = ssub.s32 %s16, %s23
      %p25 = scmp.eq.s32.totalorder %s24, 0
      %s27 = sadd.s32 %s26, 1
      %s28 = scalar_select %p25, %s26, %s27
      %p31 = pneg %p25
      %p32 = scmp.eq.s32.totalorder %s16, 3
      %p33 = por %p31, %p32
      %p34 = scmp.ne.s32.totalorder %s26, %s29
      %p35 = scmp.eq.s32.totalorder %s16, 0
      %p36 = por %p34, %p35
      %p37 = scmp.ne.s32.totalorder %s26, %s29
      %p38 = scmp.eq.s32.totalorder %s21, 3
      %p39 = por %p37, %p38
      %p40 = scmp.ne.s32.totalorder %s29, %s30
      %p41 = scmp.eq.s32.totalorder %s21, 0
      %p42 = por %p40, %p41
      %p43 = scmp.ne.s32.totalorder %s29, %s30
      %p44 = scmp.eq.s32.totalorder %s22, 3
      %p45 = por %p43, %p44
      %p47 = scmp.ne.s32.totalorder %s30, %s46
      %p48 = scmp.eq.s32.totalorder %s22, 0
      %p49 = por %p47, %p48
      %s50 = ssub.s32 %s16, %s23
      %p51 = scmp.eq.s32.totalorder %s50, 0
      %s53 = sadd.s32 %s52, 1
      %s54 = scalar_select %p51, %s52, %s53
      %p57 = pneg %p51
      %p58 = scmp.eq.s32.totalorder %s16, 3
      %p59 = por %p57, %p58
      %p60 = scmp.ne.s32.totalorder %s52, %s55
      %p61 = scmp.eq.s32.totalorder %s16, 0
      %p62 = por %p60, %p61
      %p63 = scmp.ne.s32.totalorder %s52, %s55
      %p64 = scmp.eq.s32.totalorder %s21, 3
      %p65 = por %p63, %p64
      %p66 = scmp.ne.s32.totalorder %s55, %s56
      %p67 = scmp.eq.s32.totalorder %s21, 0
      %p68 = por %p66, %p67
      %p69 = scmp.ne.s32.totalorder %s55, %s56
      %p70 = scmp.eq.s32.totalorder %s22, 3
      %p71 = por %p69, %p70
      %p73 = scmp.ne.s32.totalorder %s56, %s72
      %p74 = scmp.eq.s32.totalorder %s22, 0
      %p75 = por %p73, %p74
      %s77 = sadd.s32 %s76, 1
      %p80 = scmp.eq.s32.totalorder %s16, 3
      %p81 = scmp.ne.s32.totalorder %s76, %s78
      %p82 = scmp.eq.s32.totalorder %s16, 0
      %p83 = por %p81, %p82
      %p84 = scmp.ne.s32.totalorder %s76, %s78
      %p85 = scmp.eq.s32.totalorder %s21, 3
      %p86 = por %p84, %p85
      %p87 = scmp.ne.s32.totalorder %s78, %s79
      %p88 = scmp.eq.s32.totalorder %s21, 0
      %p89 = por %p87, %p88
      %p90 = scmp.ne.s32.totalorder %s78, %s79
      %p91 = scmp.eq.s32.totalorder %s22, 3
      %p92 = por %p90, %p91
      %p94 = scmp.ne.s32.totalorder %s79, %s93
      %p95 = scmp.eq.s32.totalorder %s22, 0
      %p96 = por %p94, %p95
      %s98 = sadd.s32 %s97, 1
      %p101 = scmp.eq.s32.totalorder %s16, 3
      %p102 = scmp.ne.s32.totalorder %s97, %s99
      %p103 = scmp.eq.s32.totalorder %s16, 0
      %p104 = por %p102, %p103
      %p105 = scmp.ne.s32.totalorder %s97, %s99
      %p106 = scmp.eq.s32.totalorder %s21, 3
      %p107 = por %p105, %p106
      %p108 = scmp.ne.s32.totalorder %s99, %s100
      %p109 = scmp.eq.s32.totalorder %s21, 0
      %p110 = por %p108, %p109
      %p111 = scmp.ne.s32.totalorder %s99, %s100
      %p112 = scmp.eq.s32.totalorder %s22, 3
      %p113 = por %p111, %p112
      %p115 = scmp.ne.s32.totalorder %s100, %s114
      %p116 = scmp.eq.s32.totalorder %s22, 0
      %p117 = por %p115, %p116
      %s118 = ssub.s32 %s16, %s23
      %p119 = scmp.eq.s32.totalorder %s118, 0
      %s121 = sadd.s32 %s120, 1
      %s122 = scalar_select %p119, %s120, %s121
      %p125 = pneg %p119
      %p126 = scmp.eq.s32.totalorder %s16, 3
      %p127 = por %p125, %p126
      %p128 = scmp.ne.s32.totalorder %s120, %s123
      %p129 = scmp.eq.s32.totalorder %s16, 0
      %p130 = por %p128, %p129
      %p131 = scmp.ne.s32.totalorder %s120, %s123
      %p132 = scmp.eq.s32.totalorder %s21, 3
      %p133 = por %p131, %p132
      %p134 = scmp.ne.s32.totalorder %s123, %s124
      %p135 = scmp.eq.s32.totalorder %s21, 0
      %p136 = por %p134, %p135
      %p137 = scmp.ne.s32.totalorder %s123, %s124
      %p138 = scmp.eq.s32.totalorder %s22, 3
      %p139 = por %p137, %p138
      %p141 = scmp.ne.s32.totalorder %s124, %s140
      %p142 = scmp.eq.s32.totalorder %s22, 0
      %p143 = por %p141, %p142
      %s144 = ssub.s32 %s16, %s23
      %p145 = scmp.eq.s32.totalorder %s144, 0
      %s147 = sadd.s32 %s146, 1
      %s148 = scalar_select %p145, %s146, %s147
      %p151 = pneg %p145
      %p152 = scmp.eq.s32.totalorder %s16, 3
      %p153 = por %p151, %p152
      %p154 = scmp.ne.s32.totalorder %s146, %s149
      %p155 = scmp.eq.s32.totalorder %s16, 0
      %p156 = por %p154, %p155
      %p157 = scmp.ne.s32.totalorder %s146, %s149
      %p158 = scmp.eq.s32.totalorder %s21, 3
      %p159 = por %p157, %p158
      %p160 = scmp.ne.s32.totalorder %s149, %s150
      %p161 = scmp.eq.s32.totalorder %s21, 0
      %p162 = por %p160, %p161
      %p163 = scmp.ne.s32.totalorder %s149, %s150
      %p164 = scmp.eq.s32.totalorder %s22, 3
      %p165 = por %p163, %p164
      %p167 = scmp.ne.s32.totalorder %s150, %s166
      %p168 = scmp.eq.s32.totalorder %s22, 0
      %p169 = por %p167, %p168
      %s170 = ssub.s32 %s16, %s23
      %p171 = scmp.eq.s32.totalorder %s170, 0
      %s173 = sadd.s32 %s172, 1
      %s174 = scalar_select %p171, %s172, %s173
      %p177 = pneg %p171
      %p178 = scmp.eq.s32.totalorder %s16, 3
      %p179 = por %p177, %p178
      %p180 = scmp.ne.s32.totalorder %s172, %s175
      %p181 = scmp.eq.s32.totalorder %s16, 0
      %p182 = por %p180, %p181
      %p183 = scmp.ne.s32.totalorder %s172, %s175
      %p184 = scmp.eq.s32.totalorder %s21, 3
      %p185 = por %p183, %p184
      %p186 = scmp.ne.s32.totalorder %s175, %s176
      %p187 = scmp.eq.s32.totalorder %s21, 0
      %p188 = por %p186, %p187
      %p189 = scmp.ne.s32.totalorder %s175, %s176
      %p190 = scmp.eq.s32.totalorder %s22, 3
      %p191 = por %p189, %p190
      %p193 = scmp.ne.s32.totalorder %s176, %s192
      %p194 = scmp.eq.s32.totalorder %s22, 0
      %p195 = por %p193, %p194
      %p196 = scmp.le.s32.totalorder 1, %s16
      %p197 = scmp.lt.s32.totalorder %s16, 5
      %p198 = pnand %p196, %p197
      %p199 = pneg %p198
      // Predicated region
      $region9: #{vae_forward.1} parent=5 // pred_check
        _
      $region10: #{vae_forward.1} parent=5 // pred_check_branch
        %201 = sbr.rel (%p198) target = $region12
      $region11: #{vae_forward.1} parent=5 // pred_region
        %s202 = ssub.s32 %s16, 1
        // Predicated region
        $region13: #{vae_forward.1} parent=11 // pred_check
          %p203 = pneg %p89
        $region14: #{vae_forward.1} parent=11 // pred_check_branch
          %205 = sbr.rel (%p203) target = $region16
        $region15: #{vae_forward.1} parent=11 // pred_region
          _
        $region16: #{vae_forward.1} parent=11 // pred_fallthru
          _
        // Predicated region
        $region17: #{vae_forward.1} parent=11 // pred_check
          %p206 = pneg %p110
        $region18: #{vae_forward.1} parent=11 // pred_check_branch
          %208 = sbr.rel (%p206) target = $region20
        $region19: #{vae_forward.1} parent=11 // pred_region
          _
        $region20: #{vae_forward.1} parent=11 // pred_fallthru
          _
      $region12: #{vae_forward.1} parent=5 // pred_fallthru
        _
      %p209 = scmp.lt.s32.totalorder %s16, 4
      // Predicated region
      $region21: #{vae_forward.1} parent=5 // pred_check
        %p210 = pneg %p209
      $region22: #{vae_forward.1} parent=5 // pred_check_branch
        %212 = sbr.rel (%p210) target = $region24
      $region23: #{vae_forward.1} parent=5 // pred_region
        // Predicated region
        $region25: #{vae_forward.1} parent=23 // pred_check
          %p213 = pneg %p36
        $region26: #{vae_forward.1} parent=23 // pred_check_branch
          %215 = sbr.rel (%p213) target = $region28
        $region27: #{vae_forward.1} parent=23 // pred_region
          %s216 = smul.u32 8, %s16
          %p217 = scmp.lt.s32.totalorder %s216, 31
          %s218 = scalar_select %p217, %s216, 31
          %s219 = smul.addr %s218, 4
          %s220 = scalar_lea.vmem %s0, %s219
          %s221 = smul.u32 8, %s16
        $region28: #{vae_forward.1} parent=23 // pred_fallthru
          _
        // Predicated region
        $region29: #{vae_forward.1} parent=23 // pred_check
          %p222 = pneg %p62
        $region30: #{vae_forward.1} parent=23 // pred_check_branch
          %224 = sbr.rel (%p222) target = $region32
        $region31: #{vae_forward.1} parent=23 // pred_region
          %s225 = smul.u32 8, %s16
          %p226 = scmp.lt.s32.totalorder %s225, 31
          %s227 = scalar_select %p226, %s225, 31
          %s228 = smul.addr %s227, 8
          %s229 = scalar_lea.vmem %s1, %s228
          %s230 = smul.u32 8, %s16
        $region32: #{vae_forward.1} parent=23 // pred_fallthru
          _
      $region24: #{vae_forward.1} parent=5 // pred_fallthru
        _
      %p231 = scmp.le.s32.totalorder 1, %s16
      %p232 = scmp.lt.s32.totalorder %s16, 5
      %p233 = pnand %p231, %p232
      %p234 = pneg %p233
      // Predicated region
      $region33: #{vae_forward.1} parent=5 // pred_check
        _
      $region34: #{vae_forward.1} parent=5 // pred_check_branch
        %236 = sbr.rel (%p233) target = $region36
      $region35: #{vae_forward.1} parent=5 // pred_region
        %s237 = ssub.s32 %s16, 1
        %s238 = smul.u32 8, %s21
        %p239 = scmp.lt.s32.totalorder %s238, 31
        %s240 = scalar_select %p239, %s238, 31
        %s241 = smul.addr %s240, 4
        %s242 = scalar_lea.vmem %s0, %s241
        %p243 = pneg %p42
        %p244 = pneg %p39
        %s245 = smul.u32 8, %s21
        %p246 = scmp.lt.s32.totalorder %s245, 31
        %s247 = scalar_select %p246, %s245, 31
        %s248 = smul.addr %s247, 8
        %s249 = scalar_lea.vmem %s1, %s248
        %p250 = pneg %p68
        %p251 = pneg %p65
        %p252 = pneg %p89
        %p253 = pneg %p86
        %p254 = pneg %p110
        %p255 = pneg %p107
        %p256 = pneg %p136
        %p257 = pneg %p133
        %s258 = sand.u32 %s123, 1
        %s259 = scalar_lea.sflag [#allocation3], %s258
        %s260 = sand.u32 %s123, 1
        %s261 = smul.addr %s260, 64
        %s262 = scalar_lea.vmem [#allocation2], %s261
        %p263 = pneg %p162
        %p264 = pneg %p159
        %s265 = smul.u32 8, %s21
        %p266 = scmp.lt.s32.totalorder %s265, 31
        %s267 = scalar_select %p266, %s265, 31
        %s268 = smul.addr %s267, 8
        %s269 = scalar_lea.vmem %s5, %s268
        %p270 = pneg %p188
        %p271 = pneg %p185
        %s272 = smul.u32 8, %s21
        %p273 = scmp.lt.s32.totalorder %s272, 31
        %s274 = scalar_select %p273, %s272, 31
        %s275 = smul.addr %s274, 8
        %s276 = scalar_lea.vmem %s6, %s275
        %s277 = smul.u32 8, %s21
        %p278 = scmp.lt.s32.totalorder %s277, 31
        %s279 = scalar_select %p278, %s277, 31
        %s280 = smul.addr %s279, 4
        %s281 = scalar_lea.vmem %s0, %s280
        %s282 = smul.u32 8, %s21
        %s283 = smul.u32 8, %s21
        %p284 = scmp.lt.s32.totalorder %s283, 31
        %s285 = scalar_select %p284, %s283, 31
        %s286 = smul.addr %s285, 8
        %s287 = scalar_lea.vmem %s1, %s286
        %s288 = smul.u32 8, %s21
        %s289 = smul.u32 8, %s21
        %s290 = smul.u32 8, %s21
        %p291 = scmp.lt.s32.totalorder %s290, 31
        %s292 = scalar_select %p291, %s290, 31
        %s293 = smul.addr %s292, 8
        %s294 = scalar_lea.vmem %s5, %s293
        %s295 = smul.u32 8, %s21
        %s296 = smul.u32 8, %s21
        %p297 = scmp.lt.s32.totalorder %s296, 31
        %s298 = scalar_select %p297, %s296, 31
        %s299 = smul.addr %s298, 8
        %s300 = scalar_lea.vmem %s6, %s299
        %s301 = smul.u32 8, %s21
        %v303 = vld [vmem:[%s281] sm:$0xf]
        %v304 = vld [vmem:[%s281 + $0x4] sm:$0xf]
        %v305 = vld [vmem:[%s281 + $0x8] sm:$0xf]
        %v306 = vld [vmem:[%s281 + $0xc] sm:$0xf]
        %v307 = vld [vmem:[%s281 + $0x10] sm:$0xf]
        %v308 = vld [vmem:[%s281 + $0x14] sm:$0xf]
        %v309 = vld [vmem:[%s281 + $0x18] sm:$0xf]
        %v310 = vld [vmem:[%s281 + $0x1c] sm:$0xf]
        %v311 = vld [vmem:[%s3] sm:$0xf]
        %v312 = vld [vmem:[%s3 + $0x4] sm:$0xf]
        %v313 = vld [vmem:[%s3 + $0x8] sm:$0xf]
        %v314 = vld [vmem:[%s3 + $0xc] sm:$0xf]
        %v315 = vld [vmem:[%s3 + $0x10] sm:$0xf]
        %v316 = vld [vmem:[%s3 + $0x14] sm:$0xf]
        %v317 = vld [vmem:[%s3 + $0x18] sm:$0xf]
        %v318 = vld [vmem:[%s3 + $0x1c] sm:$0xf]
        %v319 = vld [vmem:[%s3 + $0x20] sm:$0xf]
        %v320 = vld [vmem:[%s3 + $0x24] sm:$0xf]
        %v321 = vld [vmem:[%s3 + $0x28] sm:$0xf]
        %v322 = vld [vmem:[%s3 + $0x2c] sm:$0xf]
        %v323 = vld [vmem:[%s3 + $0x30] sm:$0xf]
        %v324 = vld [vmem:[%s3 + $0x34] sm:$0xf]
        %v325 = vld [vmem:[%s3 + $0x38] sm:$0xf]
        %v326 = vld [vmem:[%s3 + $0x3c] sm:$0xf]
        %v327 = vld [vmem:[%s2] sm:$0x1]
        %v328 = vlaneseq
        %v329 = vshrl.u32 %v328, 7
        %v330 = vsub.s32 0, %v329
        %v331 = vrot.slane %v327, %v330
        %v340 = vunpack.c.l.b16 %v303
        %v341 = vunpack.c.l.b16 %v304
        %v342 = vunpack.c.l.b16 %v305
        %v343 = vunpack.c.l.b16 %v306
        %v344 = vunpack.c.l.b16 %v307
        %v345 = vunpack.c.l.b16 %v308
        %v346 = vunpack.c.l.b16 %v309
        %v347 = vunpack.c.l.b16 %v310
        %v348 = vpack.c.b16 %v341, %v340
        %v349 = vpack.c.b16 %v343, %v342
        %v350 = vpack.c.b16 %v345, %v344
        %v351 = vpack.c.b16 %v347, %v346
        %v372 = vunpack.c.l.b16 %v311
        %v373 = vunpack.c.l.b16 %v312
        %v374 = vunpack.c.l.b16 %v313
        %v375 = vunpack.c.l.b16 %v314
        %v376 = vunpack.c.l.b16 %v315
        %v377 = vunpack.c.l.b16 %v316
        %v378 = vunpack.c.l.b16 %v317
        %v379 = vunpack.c.l.b16 %v318
        %v380 = vunpack.c.l.b16 %v319
        %v381 = vunpack.c.l.b16 %v320
        %v382 = vunpack.c.l.b16 %v321
        %v383 = vunpack.c.l.b16 %v322
        %v384 = vunpack.c.l.b16 %v323
        %v385 = vunpack.c.l.b16 %v324
        %v386 = vunpack.c.l.b16 %v325
        %v387 = vunpack.c.l.b16 %v326
        %v388 = vpack.c.b16 %v373, %v372
        %v389 = vpack.c.b16 %v375, %v374
        %v390 = vpack.c.b16 %v377, %v376
        %v391 = vpack.c.b16 %v379, %v378
        %v392 = vpack.c.b16 %v381, %v380
        %v393 = vpack.c.b16 %v383, %v382
        %v394 = vpack.c.b16 %v385, %v384
        %v395 = vpack.c.b16 %v387, %v386
        %404 = vmatprep.subr.bf16.mxu0 0
        %405 = vmatpush1.bf16.msra.mxu0 %v388
        %406 = vmatprep.subr.bf16.mxu0 0
        %407 = vmatpush1.bf16.msra.mxu0 %v389
        %408 = vmatprep.subr.bf16.mxu0 0
        %409 = vmatpush1.bf16.msra.mxu0 %v390
        %410 = vmatprep.subr.bf16.mxu0 0
        %411 = vmatpush1.bf16.msra.mxu0 %v391
        %412 = vmatprep.subr.bf16.mxu0 0
        %413 = vmatpush1.bf16.msra.mxu0 %v392
        %414 = vmatprep.subr.bf16.mxu0 0
        %415 = vmatpush1.bf16.msra.mxu0 %v393
        %416 = vmatprep.subr.bf16.mxu0 0
        %417 = vmatpush1.bf16.msra.mxu0 %v394
        %418 = vmatprep.subr.bf16.mxu0 0
        %419 = vmatpush1.bf16.msra.mxu0 %v395
        %420 = vmatprep.subr.bf16.mxu0 0
        %421 = vmatpush1.bf16.msra.mxu0 0
        %422 = vmatprep.subr.bf16.mxu0 0
        %423 = vmatpush1.bf16.msra.mxu0 0
        %424 = vmatprep.subr.bf16.mxu0 0
        %425 = vmatpush1.bf16.msra.mxu0 0
        %426 = vmatprep.subr.bf16.mxu0 0
        %427 = vmatpush1.bf16.msra.mxu0 0
        %428 = vmatprep.subr.bf16.mxu0 0
        %429 = vmatpush1.bf16.msra.mxu0 0
        %430 = vmatprep.subr.bf16.mxu0 0
        %431 = vmatpush1.bf16.msra.mxu0 0
        %432 = vmatprep.subr.bf16.mxu0 0
        %433 = vmatpush1.bf16.msra.mxu0 0
        %434 = vmatprep.subr.bf16.mxu0 0
        %435 = vmatpush1.bf16.msra.mxu0 0
        %436 = vmatprep.mubr.bf16.mxu0 0
        %437 = vmatmul.mubr.bf16.gmra.mrb[0].mxu0 %v348
        %v438 = vpop.f32.mrb[0].mxu0
        %v439 = vadd.f32 %v331, %v438
        %v440 = vpop.f32.mrb[0].mxu0
        %v441 = vpop.f32.mrb[0].mxu0
        %v442 = vadd.f32 %v331, %v441
        %v443 = vpop.f32.mrb[0].mxu0
        %444 = vmatprep.mubr.bf16.mxu0 0
        %445 = vmatmul.mubr.bf16.gmra.mrb[0].mxu0 %v349
        %v446 = vpop.f32.mrb[0].mxu0
        %v447 = vadd.f32 %v331, %v446
        %v448 = vpop.f32.mrb[0].mxu0
        %v449 = vpop.f32.mrb[0].mxu0
        %v450 = vadd.f32 %v331, %v449
        %v451 = vpop.f32.mrb[0].mxu0
        %452 = vmatprep.mubr.bf16.mxu0 0
        %453 = vmatmul.mubr.bf16.gmra.mrb[0].mxu0 %v350
        %v454 = vpop.f32.mrb[0].mxu0
        %v455 = vadd.f32 %v331, %v454
        %v456 = vpop.f32.mrb[0].mxu0
        %v457 = vpop.f32.mrb[0].mxu0
        %v458 = vadd.f32 %v331, %v457
        %v459 = vpop.f32.mrb[0].mxu0
        %460 = vmatprep.mubr.bf16.mxu0 0
        %461 = vmatmul.mubr.bf16.gmra.mrb[0].mxu0 %v351
        %v462 = vpop.f32.mrb[0].mxu0
        %v463 = vadd.f32 %v331, %v462
        %v464 = vpop.f32.mrb[0].mxu0
        %v465 = vpop.f32.mrb[0].mxu0
        %v466 = vadd.f32 %v331, %v465
        %v467 = vpop.f32.mrb[0].mxu0
        %468 = vdwg.mxu0
        %v469 = vmax.f32 %v439, 0.0
        %v470 = vmax.f32 %v442, 0.0
        %v471 = vmax.f32 %v447, 0.0
        %v472 = vmax.f32 %v450, 0.0
        %v473 = vmax.f32 %v455, 0.0
        %v474 = vmax.f32 %v458, 0.0
        %v475 = vmax.f32 %v463, 0.0
        %v476 = vmax.f32 %v466, 0.0
        %v477 = vmin.f32 %v439, 0.0
        %v478 = vmin.f32 %v442, 0.0
        %v479 = vmin.f32 %v447, 0.0
        %v480 = vmin.f32 %v450, 0.0
        %v481 = vmin.f32 %v455, 0.0
        %v482 = vmin.f32 %v458, 0.0
        %v483 = vmin.f32 %v463, 0.0
        %v484 = vmin.f32 %v466, 0.0
        %v485 = vmul.f32 %v477, 1.442695
        %v486 = vpow.pop %v485
        %v487 = vmul.f32 %v478, 1.442695
        %v488 = vpow.pop %v487
        %v489 = vmul.f32 %v479, 1.442695
        %v490 = vpow.pop %v489
        %v491 = vmul.f32 %v480, 1.442695
        %v492 = vpow.pop %v491
        %v493 = vmul.f32 %v481, 1.442695
        %v494 = vpow.pop %v493
        %v495 = vmul.f32 %v482, 1.442695
        %v496 = vpow.pop %v495
        %v497 = vmul.f32 %v483, 1.442695
        %v498 = vpow.pop %v497
        %v499 = vmul.f32 %v484, 1.442695
        %v500 = vpow.pop %v499
        %v501 = vsub.f32 %v486, 1.0
        %v502 = vsub.f32 %v488, 1.0
        %v503 = vsub.f32 %v490, 1.0
        %v504 = vsub.f32 %v492, 1.0
        %v505 = vsub.f32 %v494, 1.0
        %v506 = vsub.f32 %v496, 1.0
        %v507 = vsub.f32 %v498, 1.0
        %v508 = vsub.f32 %v500, 1.0
        %v509 = vmul.f32 %v501, 1.6732632
        %v510 = vmul.f32 %v502, 1.6732632
        %v511 = vmul.f32 %v503, 1.6732632
        %v512 = vmul.f32 %v504, 1.6732632
        %v513 = vmul.f32 %v505, 1.6732632
        %v514 = vmul.f32 %v506, 1.6732632
        %v515 = vmul.f32 %v507, 1.6732632
        %v516 = vmul.f32 %v508, 1.6732632
        %v517 = vadd.f32 %v469, %v509
        %v518 = vadd.f32 %v470, %v510
        %v519 = vadd.f32 %v471, %v511
        %v520 = vadd.f32 %v472, %v512
        %v521 = vadd.f32 %v473, %v513
        %v522 = vadd.f32 %v474, %v514
        %v523 = vadd.f32 %v475, %v515
        %v524 = vadd.f32 %v476, %v516
        %v525 = vmul.f32 %v517, 1.050701
        %v526 = vmul.f32 %v518, 1.050701
        %v527 = vmul.f32 %v519, 1.050701
        %v528 = vmul.f32 %v520, 1.050701
        %v529 = vmul.f32 %v521, 1.050701
        %v530 = vmul.f32 %v522, 1.050701
        %v531 = vmul.f32 %v523, 1.050701
        %v532 = vmul.f32 %v524, 1.050701
        %v533 = vpack.c.bf16 %v526, %v525
        %v534 = vpack.c.bf16 %v528, %v527
        %v535 = vpack.c.bf16 %v530, %v529
        %v536 = vpack.c.bf16 %v532, %v531
        %s537 = scalar_lea.vmem %s3, 64
        %v538 = vld [vmem:[%s537] sm:$0xf]
        %v539 = vld [vmem:[%s537 + $0x4] sm:$0xf]
        %v540 = vld [vmem:[%s537 + $0x8] sm:$0xf]
        %v541 = vld [vmem:[%s537 + $0xc] sm:$0xf]
        %v542 = vld [vmem:[%s537 + $0x10] sm:$0xf]
        %v543 = vld [vmem:[%s537 + $0x14] sm:$0xf]
        %v544 = vld [vmem:[%s537 + $0x18] sm:$0xf]
        %v545 = vld [vmem:[%s537 + $0x1c] sm:$0xf]
        %v546 = vld [vmem:[%s537 + $0x20] sm:$0xf]
        %v547 = vld [vmem:[%s537 + $0x24] sm:$0xf]
        %v548 = vld [vmem:[%s537 + $0x28] sm:$0xf]
        %v549 = vld [vmem:[%s537 + $0x2c] sm:$0xf]
        %v550 = vld [vmem:[%s537 + $0x30] sm:$0xf]
        %v551 = vld [vmem:[%s537 + $0x34] sm:$0xf]
        %v552 = vld [vmem:[%s537 + $0x38] sm:$0xf]
        %v553 = vld [vmem:[%s537 + $0x3c] sm:$0xf]
        %v554 = vld [vmem:[%s2 + $0x1] sm:$0x1]
        %v555 = vlaneseq
        %v556 = vshrl.u32 %v555, 7
        %v557 = vsub.s32 0, %v556
        %v558 = vrot.slane %v554, %v557
        %v575 = vunpack.c.l.b16 %v538
        %v576 = vunpack.c.l.b16 %v539
        %v577 = vunpack.c.l.b16 %v540
        %v578 = vunpack.c.l.b16 %v541
        %v579 = vunpack.c.l.b16 %v542
        %v580 = vunpack.c.l.b16 %v543
        %v581 = vunpack.c.l.b16 %v544
        %v582 = vunpack.c.l.b16 %v545
        %v583 = vunpack.c.l.b16 %v546
        %v584 = vunpack.c.l.b16 %v547
        %v585 = vunpack.c.l.b16 %v548
        %v586 = vunpack.c.l.b16 %v549
        %v587 = vunpack.c.l.b16 %v550
        %v588 = vunpack.c.l.b16 %v551
        %v589 = vunpack.c.l.b16 %v552
        %v590 = vunpack.c.l.b16 %v553
        %v591 = vpack.c.b16 %v576, %v575
        %v592 = vpack.c.b16 %v578, %v577
        %v593 = vpack.c.b16 %v580, %v579
        %v594 = vpack.c.b16 %v582, %v581
        %v595 = vpack.c.b16 %v584, %v583
        %v596 = vpack.c.b16 %v586, %v585
        %v597 = vpack.c.b16 %v588, %v587
        %v598 = vpack.c.b16 %v590, %v589
        %607 = vmatprep.subr.bf16.mxu0 0
        %608 = vmatpush1.bf16.msra.mxu0 %v591
        %609 = vmatprep.subr.bf16.mxu0 0
        %610 = vmatpush1.bf16.msra.mxu0 %v592
        %611 = vmatprep.subr.bf16.mxu0 0
        %612 = vmatpush1.bf16.msra.mxu0 %v593
        %613 = vmatprep.subr.bf16.mxu0 0
        %614 = vmatpush1.bf16.msra.mxu0 %v594
        %615 = vmatprep.subr.bf16.mxu0 0
        %616 = vmatpush1.bf16.msra.mxu0 %v595
        %617 = vmatprep.subr.bf16.mxu0 0
        %618 = vmatpush1.bf16.msra.mxu0 %v596
        %619 = vmatprep.subr.bf16.mxu0 0
        %620 = vmatpush1.bf16.msra.mxu0 %v597
        %621 = vmatprep.subr.bf16.mxu0 0
        %622 = vmatpush1.bf16.msra.mxu0 %v598
        %623 = vmatprep.subr.bf16.mxu0 0
        %624 = vmatpush1.bf16.msra.mxu0 0
        %625 = vmatprep.subr.bf16.mxu0 0
        %626 = vmatpush1.bf16.msra.mxu0 0
        %627 = vmatprep.subr.bf16.mxu0 0
        %628 = vmatpush1.bf16.msra.mxu0 0
        %629 = vmatprep.subr.bf16.mxu0 0
        %630 = vmatpush1.bf16.msra.mxu0 0
        %631 = vmatprep.subr.bf16.mxu0 0
        %632 = vmatpush1.bf16.msra.mxu0 0
        %633 = vmatprep.subr.bf16.mxu0 0
        %634 = vmatpush1.bf16.msra.mxu0 0
        %635 = vmatprep.subr.bf16.mxu0 0
        %636 = vmatpush1.bf16.msra.mxu0 0
        %637 = vmatprep.subr.bf16.mxu0 0
        %638 = vmatpush1.bf16.msra.mxu0 0
        %639 = vmatprep.mubr.bf16.mxu0 0
        %640 = vmatmul.mubr.bf16.gmra.mrb[0].mxu0 %v533
        %v641 = vpop.f32.mrb[0].mxu0
        %v642 = vadd.f32 %v558, %v641
        %v643 = vpop.f32.mrb[0].mxu0
        %v644 = vpop.f32.mrb[0].mxu0
        %v645 = vadd.f32 %v558, %v644
        %v646 = vpop.f32.mrb[0].mxu0
        %647 = vmatprep.mubr.bf16.mxu0 0
        %648 = vmatmul.mubr.bf16.gmra.mrb[0].mxu0 %v534
        %v649 = vpop.f32.mrb[0].mxu0
        %v650 = vadd.f32 %v558, %v649
        %v651 = vpop.f32.mrb[0].mxu0
        %v652 = vpop.f32.mrb[0].mxu0
        %v653 = vadd.f32 %v558, %v652
        %v654 = vpop.f32.mrb[0].mxu0
        %655 = vmatprep.mubr.bf16.mxu0 0
        %656 = vmatmul.mubr.bf16.gmra.mrb[0].mxu0 %v535
        %v657 = vpop.f32.mrb[0].mxu0
        %v658 = vadd.f32 %v558, %v657
        %v659 = vpop.f32.mrb[0].mxu0
        %v660 = vpop.f32.mrb[0].mxu0
        %v661 = vadd.f32 %v558, %v660
        %v662 = vpop.f32.mrb[0].mxu0
        %663 = vmatprep.mubr.bf16.mxu0 0
        %664 = vmatmul.mubr.bf16.gmra.mrb[0].mxu0 %v536
        %v665 = vpop.f32.mrb[0].mxu0
        %v666 = vadd.f32 %v558, %v665
        %v667 = vpop.f32.mrb[0].mxu0
        %v668 = vpop.f32.mrb[0].mxu0
        %v669 = vadd.f32 %v558, %v668
        %v670 = vpop.f32.mrb[0].mxu0
        %671 = vdwg.mxu0
        %v672 = vmax.f32 %v642, 0.0
        %v673 = vmax.f32 %v645, 0.0
        %v674 = vmax.f32 %v650, 0.0
        %v675 = vmax.f32 %v653, 0.0
        %v676 = vmax.f32 %v658, 0.0
        %v677 = vmax.f32 %v661, 0.0
        %v678 = vmax.f32 %v666, 0.0
        %v679 = vmax.f32 %v669, 0.0
        %v680 = vmin.f32 %v642, 0.0
        %v681 = vmin.f32 %v645, 0.0
        %v682 = vmin.f32 %v650, 0.0
        %v683 = vmin.f32 %v653, 0.0
        %v684 = vmin.f32 %v658, 0.0
        %v685 = vmin.f32 %v661, 0.0
        %v686 = vmin.f32 %v666, 0.0
        %v687 = vmin.f32 %v669, 0.0
        %v688 = vmul.f32 %v680, 1.442695
        %v689 = vpow.pop %v688
        %v690 = vmul.f32 %v681, 1.442695
        %v691 = vpow.pop %v690
        %v692 = vmul.f32 %v682, 1.442695
        %v693 = vpow.pop %v692
        %v694 = vmul.f32 %v683, 1.442695
        %v695 = vpow.pop %v694
        %v696 = vmul.f32 %v684, 1.442695
        %v697 = vpow.pop %v696
        %v698 = vmul.f32 %v685, 1.442695
        %v699 = vpow.pop %v698
        %v700 = vmul.f32 %v686, 1.442695
        %v701 = vpow.pop %v700
        %v702 = vmul.f32 %v687, 1.442695
        %v703 = vpow.pop %v702
        %v704 = vsub.f32 %v689, 1.0
        %v705 = vsub.f32 %v691, 1.0
        %v706 = vsub.f32 %v693, 1.0
        %v707 = vsub.f32 %v695, 1.0
        %v708 = vsub.f32 %v697, 1.0
        %v709 = vsub.f32 %v699, 1.0
        %v710 = vsub.f32 %v701, 1.0
        %v711 = vsub.f32 %v703, 1.0
        %v712 = vmul.f32 %v704, 1.6732632
        %v713 = vmul.f32 %v705, 1.6732632
        %v714 = vmul.f32 %v706, 1.6732632
        %v715 = vmul.f32 %v707, 1.6732632
        %v716 = vmul.f32 %v708, 1.6732632
        %v717 = vmul.f32 %v709, 1.6732632
        %v718 = vmul.f32 %v710, 1.6732632
        %v719 = vmul.f32 %v711, 1.6732632
        %v720 = vadd.f32 %v672, %v712
        %v721 = vadd.f32 %v673, %v713
        %v722 = vadd.f32 %v674, %v714
        %v723 = vadd.f32 %v675, %v715
        %v724 = vadd.f32 %v676, %v716
        %v725 = vadd.f32 %v677, %v717
        %v726 = vadd.f32 %v678, %v718
        %v727 = vadd.f32 %v679, %v719
        %v728 = vmul.f32 %v720, 1.050701
        %v729 = vmul.f32 %v721, 1.050701
        %v730 = vmul.f32 %v722, 1.050701
        %v731 = vmul.f32 %v723, 1.050701
        %v732 = vmul.f32 %v724, 1.050701
        %v733 = vmul.f32 %v725, 1.050701
        %v734 = vmul.f32 %v726, 1.050701
        %v735 = vmul.f32 %v727, 1.050701
        %v736 = vpack.c.bf16 %v729, %v728
        %v737 = vpack.c.bf16 %v731, %v730
        %v738 = vpack.c.bf16 %v733, %v732
        %v739 = vpack.c.bf16 %v735, %v734
        %s740 = scalar_lea.vmem %s3, 128
        %v741 = vld [vmem:[%s740] sm:$0xf]
        %v742 = vld [vmem:[%s740 + $0x4] sm:$0xf]
        %v743 = vld [vmem:[%s740 + $0x8] sm:$0xf]
        %v744 = vld [vmem:[%s740 + $0xc] sm:$0xf]
        %v745 = vld [vmem:[%s740 + $0x10] sm:$0xf]
        %v746 = vld [vmem:[%s740 + $0x14] sm:$0xf]
        %v747 = vld [vmem:[%s740 + $0x18] sm:$0xf]
        %v748 = vld [vmem:[%s740 + $0x1c] sm:$0xf]
        %v749 = vld [vmem:[%s740 + $0x20] sm:$0xf]
        %v750 = vld [vmem:[%s740 + $0x24] sm:$0xf]
        %v751 = vld [vmem:[%s740 + $0x28] sm:$0xf]
        %v752 = vld [vmem:[%s740 + $0x2c] sm:$0xf]
        %v753 = vld [vmem:[%s740 + $0x30] sm:$0xf]
        %v754 = vld [vmem:[%s740 + $0x34] sm:$0xf]
        %v755 = vld [vmem:[%s740 + $0x38] sm:$0xf]
        %v756 = vld [vmem:[%s740 + $0x3c] sm:$0xf]
        %v757 = vld [vmem:[%s2 + $0x2] sm:$0x1]
        %v758 = vlaneseq
        %v759 = vshrl.u32 %v758, 7
        %v760 = vsub.s32 0, %v759
        %v761 = vrot.slane %v757, %v760
        %v778 = vunpack.c.l.b16 %v741
        %v779 = vunpack.c.l.b16 %v742
        %v780 = vunpack.c.l.b16 %v743
        %v781 = vunpack.c.l.b16 %v744
        %v782 = vunpack.c.l.b16 %v745
        %v783 = vunpack.c.l.b16 %v746
        %v784 = vunpack.c.l.b16 %v747
        %v785 = vunpack.c.l.b16 %v748
        %v786 = vunpack.c.l.b16 %v749
        %v787 = vunpack.c.l.b16 %v750
        %v788 = vunpack.c.l.b16 %v751
        %v789 = vunpack.c.l.b16 %v752
        %v790 = vunpack.c.l.b16 %v753
        %v791 = vunpack.c.l.b16 %v754
        %v792 = vunpack.c.l.b16 %v755
        %v793 = vunpack.c.l.b16 %v756
        %v794 = vpack.c.b16 %v779, %v778
        %v795 = vpack.c.b16 %v781, %v780
        %v796 = vpack.c.b16 %v783, %v782
        %v797 = vpack.c.b16 %v785, %v784
        %v798 = vpack.c.b16 %v787, %v786
        %v799 = vpack.c.b16 %v789, %v788
        %v800 = vpack.c.b16 %v791, %v790
        %v801 = vpack.c.b16 %v793, %v792
        %810 = vmatprep.subr.bf16.mxu0 0
        %811 = vmatpush1.bf16.msra.mxu0 %v794
        %812 = vmatprep.subr.bf16.mxu0 0
        %813 = vmatpush1.bf16.msra.mxu0 %v795
        %814 = vmatprep.subr.bf16.mxu0 0
        %815 = vmatpush1.bf16.msra.mxu0 %v796
        %816 = vmatprep.subr.bf16.mxu0 0
        %817 = vmatpush1.bf16.msra.mxu0 %v797
        %818 = vmatprep.subr.bf16.mxu0 0
        %819 = vmatpush1.bf16.msra.mxu0 %v798
        %820 = vmatprep.subr.bf16.mxu0 0
        %821 = vmatpush1.bf16.msra.mxu0 %v799
        %822 = vmatprep.subr.bf16.mxu0 0
        %823 = vmatpush1.bf16.msra.mxu0 %v800
        %824 = vmatprep.subr.bf16.mxu0 0
        %825 = vmatpush1.bf16.msra.mxu0 %v801
        %826 = vmatprep.subr.bf16.mxu0 0
        %827 = vmatpush1.bf16.msra.mxu0 0
        %828 = vmatprep.subr.bf16.mxu0 0
        %829 = vmatpush1.bf16.msra.mxu0 0
        %830 = vmatprep.subr.bf16.mxu0 0
        %831 = vmatpush1.bf16.msra.mxu0 0
        %832 = vmatprep.subr.bf16.mxu0 0
        %833 = vmatpush1.bf16.msra.mxu0 0
        %834 = vmatprep.subr.bf16.mxu0 0
        %835 = vmatpush1.bf16.msra.mxu0 0
        %836 = vmatprep.subr.bf16.mxu0 0
        %837 = vmatpush1.bf16.msra.mxu0 0
        %838 = vmatprep.subr.bf16.mxu0 0
        %839 = vmatpush1.bf16.msra.mxu0 0
        %840 = vmatprep.subr.bf16.mxu0 0
        %841 = vmatpush1.bf16.msra.mxu0 0
        %842 = vmatprep.mubr.bf16.mxu0 0
        %843 = vmatmul.mubr.bf16.gmra.mrb[0].mxu0 %v736
        %v844 = vpop.f32.mrb[0].mxu0
        %v845 = vadd.f32 %v761, %v844
        %v846 = vpop.f32.mrb[0].mxu0
        %v847 = vpop.f32.mrb[0].mxu0
        %v848 = vadd.f32 %v761, %v847
        %v849 = vpop.f32.mrb[0].mxu0
        %850 = vmatprep.mubr.bf16.mxu0 0
        %851 = vmatmul.mubr.bf16.gmra.mrb[0].mxu0 %v737
        %v852 = vpop.f32.mrb[0].mxu0
        %v853 = vadd.f32 %v761, %v852
        %v854 = vpop.f32.mrb[0].mxu0
        %v855 = vpop.f32.mrb[0].mxu0
        %v856 = vadd.f32 %v761, %v855
        %v857 = vpop.f32.mrb[0].mxu0
        %858 = vmatprep.mubr.bf16.mxu0 0
        %859 = vmatmul.mubr.bf16.gmra.mrb[0].mxu0 %v738
        %v860 = vpop.f32.mrb[0].mxu0
        %v861 = vadd.f32 %v761, %v860
        %v862 = vpop.f32.mrb[0].mxu0
        %v863 = vpop.f32.mrb[0].mxu0
        %v864 = vadd.f32 %v761, %v863
        %v865 = vpop.f32.mrb[0].mxu0
        %866 = vmatprep.mubr.bf16.mxu0 0
        %867 = vmatmul.mubr.bf16.gmra.mrb[0].mxu0 %v739
        %v868 = vpop.f32.mrb[0].mxu0
        %v869 = vadd.f32 %v761, %v868
        %v870 = vpop.f32.mrb[0].mxu0
        %v871 = vpop.f32.mrb[0].mxu0
        %v872 = vadd.f32 %v761, %v871
        %v873 = vpop.f32.mrb[0].mxu0
        %874 = vdwg.mxu0
        %v875 = vmax.f32 %v845, 0.0
        %v876 = vmax.f32 %v848, 0.0
        %v877 = vmax.f32 %v853, 0.0
        %v878 = vmax.f32 %v856, 0.0
        %v879 = vmax.f32 %v861, 0.0
        %v880 = vmax.f32 %v864, 0.0
        %v881 = vmax.f32 %v869, 0.0
        %v882 = vmax.f32 %v872, 0.0
        %v883 = vmin.f32 %v845, 0.0
        %v884 = vmin.f32 %v848, 0.0
        %v885 = vmin.f32 %v853, 0.0
        %v886 = vmin.f32 %v856, 0.0
        %v887 = vmin.f32 %v861, 0.0
        %v888 = vmin.f32 %v864, 0.0
        %v889 = vmin.f32 %v869, 0.0
        %v890 = vmin.f32 %v872, 0.0
        %v891 = vmul.f32 %v883, 1.442695
        %v892 = vpow.pop %v891
        %v893 = vmul.f32 %v884, 1.442695
        %v894 = vpow.pop %v893
        %v895 = vmul.f32 %v885, 1.442695
        %v896 = vpow.pop %v895
        %v897 = vmul.f32 %v886, 1.442695
        %v898 = vpow.pop %v897
        %v899 = vmul.f32 %v887, 1.442695
        %v900 = vpow.pop %v899
        %v901 = vmul.f32 %v888, 1.442695
        %v902 = vpow.pop %v901
        %v903 = vmul.f32 %v889, 1.442695
        %v904 = vpow.pop %v903
        %v905 = vmul.f32 %v890, 1.442695
        %v906 = vpow.pop %v905
        %v907 = vsub.f32 %v892, 1.0
        %v908 = vsub.f32 %v894, 1.0
        %v909 = vsub.f32 %v896, 1.0
        %v910 = vsub.f32 %v898, 1.0
        %v911 = vsub.f32 %v900, 1.0
        %v912 = vsub.f32 %v902, 1.0
        %v913 = vsub.f32 %v904, 1.0
        %v914 = vsub.f32 %v906, 1.0
        %v915 = vmul.f32 %v907, 1.6732632
        %v916 = vmul.f32 %v908, 1.6732632
        %v917 = vmul.f32 %v909, 1.6732632
        %v918 = vmul.f32 %v910, 1.6732632
        %v919 = vmul.f32 %v911, 1.6732632
        %v920 = vmul.f32 %v912, 1.6732632
        %v921 = vmul.f32 %v913, 1.6732632
        %v922 = vmul.f32 %v914, 1.6732632
        %v923 = vadd.f32 %v875, %v915
        %v924 = vadd.f32 %v876, %v916
        %v925 = vadd.f32 %v877, %v917
        %v926 = vadd.f32 %v878, %v918
        %v927 = vadd.f32 %v879, %v919
        %v928 = vadd.f32 %v880, %v920
        %v929 = vadd.f32 %v881, %v921
        %v930 = vadd.f32 %v882, %v922
        %v931 = vmul.f32 %v923, 1.050701
        %v932 = vmul.f32 %v924, 1.050701
        %v933 = vmul.f32 %v925, 1.050701
        %v934 = vmul.f32 %v926, 1.050701
        %v935 = vmul.f32 %v927, 1.050701
        %v936 = vmul.f32 %v928, 1.050701
        %v937 = vmul.f32 %v929, 1.050701
        %v938 = vmul.f32 %v930, 1.050701
        %v939 = vpack.c.bf16 %v932, %v931
        %v940 = vpack.c.bf16 %v934, %v933
        %v941 = vpack.c.bf16 %v936, %v935
        %v942 = vpack.c.bf16 %v938, %v937
        %s943 = scalar_lea.vmem %s3, 192
        %v944 = vld [vmem:[%s943] sm:$0xf]
        %v945 = vld [vmem:[%s943 + $0x4] sm:$0xf]
        %v946 = vld [vmem:[%s943 + $0x8] sm:$0xf]
        %v947 = vld [vmem:[%s943 + $0xc] sm:$0xf]
        %v948 = vld [vmem:[%s943 + $0x10] sm:$0xf]
        %v949 = vld [vmem:[%s943 + $0x14] sm:$0xf]
        %v950 = vld [vmem:[%s943 + $0x18] sm:$0xf]
        %v951 = vld [vmem:[%s943 + $0x1c] sm:$0xf]
        %v952 = vld [vmem:[%s943 + $0x20] sm:$0xf]
        %v953 = vld [vmem:[%s943 + $0x24] sm:$0xf]
        %v954 = vld [vmem:[%s943 + $0x28] sm:$0xf]
        %v955 = vld [vmem:[%s943 + $0x2c] sm:$0xf]
        %v956 = vld [vmem:[%s943 + $0x30] sm:$0xf]
        %v957 = vld [vmem:[%s943 + $0x34] sm:$0xf]
        %v958 = vld [vmem:[%s943 + $0x38] sm:$0xf]
        %v959 = vld [vmem:[%s943 + $0x3c] sm:$0xf]
        %v960 = vld [vmem:[%s2 + $0x3] sm:$0x1]
        %v961 = vlaneseq
        %v962 = vshrl.u32 %v961, 7
        %v963 = vsub.s32 0, %v962
        %v964 = vrot.slane %v960, %v963
        %v981 = vunpack.c.l.b16 %v944
        %v982 = vunpack.c.l.b16 %v945
        %v983 = vunpack.c.l.b16 %v946
        %v984 = vunpack.c.l.b16 %v947
        %v985 = vunpack.c.l.b16 %v948
        %v986 = vunpack.c.l.b16 %v949
        %v987 = vunpack.c.l.b16 %v950
        %v988 = vunpack.c.l.b16 %v951
        %v989 = vunpack.c.l.b16 %v952
        %v990 = vunpack.c.l.b16 %v953
        %v991 = vunpack.c.l.b16 %v954
        %v992 = vunpack.c.l.b16 %v955
        %v993 = vunpack.c.l.b16 %v956
        %v994 = vunpack.c.l.b16 %v957
        %v995 = vunpack.c.l.b16 %v958
        %v996 = vunpack.c.l.b16 %v959
        %v997 = vpack.c.b16 %v982, %v981
        %v998 = vpack.c.b16 %v984, %v983
        %v999 = vpack.c.b16 %v986, %v985
        %v1000 = vpack.c.b16 %v988, %v987
        %v1001 = vpack.c.b16 %v990, %v989
        %v1002 = vpack.c.b16 %v992, %v991
        %v1003 = vpack.c.b16 %v994, %v993
        %v1004 = vpack.c.b16 %v996, %v995
        %1013 = vmatprep.subr.bf16.mxu0 0
        %1014 = vmatpush1.bf16.msra.mxu0 %v997
        %1015 = vmatprep.subr.bf16.mxu0 0
        %1016 = vmatpush1.bf16.msra.mxu0 %v998
        %1017 = vmatprep.subr.bf16.mxu0 0
        %1018 = vmatpush1.bf16.msra.mxu0 %v999
        %1019 = vmatprep.subr.bf16.mxu0 0
        %1020 = vmatpush1.bf16.msra.mxu0 %v1000
        %1021 = vmatprep.subr.bf16.mxu0 0
        %1022 = vmatpush1.bf16.msra.mxu0 %v1001
        %1023 = vmatprep.subr.bf16.mxu0 0
        %1024 = vmatpush1.bf16.msra.mxu0 %v1002
        %1025 = vmatprep.subr.bf16.mxu0 0
        %1026 = vmatpush1.bf16.msra.mxu0 %v1003
        %1027 = vmatprep.subr.bf16.mxu0 0
        %1028 = vmatpush1.bf16.msra.mxu0 %v1004
        %1029 = vmatprep.subr.bf16.mxu0 0
        %1030 = vmatpush1.bf16.msra.mxu0 0
        %1031 = vmatprep.subr.bf16.mxu0 0
        %1032 = vmatpush1.bf16.msra.mxu0 0
        %1033 = vmatprep.subr.bf16.mxu0 0
        %1034 = vmatpush1.bf16.msra.mxu0 0
        %1035 = vmatprep.subr.bf16.mxu0 0
        %1036 = vmatpush1.bf16.msra.mxu0 0
        %1037 = vmatprep.subr.bf16.mxu0 0
        %1038 = vmatpush1.bf16.msra.mxu0 0
        %1039 = vmatprep.subr.bf16.mxu0 0
        %1040 = vmatpush1.bf16.msra.mxu0 0
        %1041 = vmatprep.subr.bf16.mxu0 0
        %1042 = vmatpush1.bf16.msra.mxu0 0
        %1043 = vmatprep.subr.bf16.mxu0 0
        %1044 = vmatpush1.bf16.msra.mxu0 0
        %1045 = vmatprep.mubr.bf16.mxu0 0
        %1046 = vmatmul.mubr.bf16.gmra.mrb[0].mxu0 %v939
        %v1047 = vpop.f32.mrb[0].mxu0
        %v1048 = vadd.f32 %v964, %v1047
        %v1049 = vpop.f32.mrb[0].mxu0
        %v1050 = vpop.f32.mrb[0].mxu0
        %v1051 = vadd.f32 %v964, %v1050
        %v1052 = vpop.f32.mrb[0].mxu0
        %1053 = vmatprep.mubr.bf16.mxu0 0
        %1054 = vmatmul.mubr.bf16.gmra.mrb[0].mxu0 %v940
        %v1055 = vpop.f32.mrb[0].mxu0
        %v1056 = vadd.f32 %v964, %v1055
        %v1057 = vpop.f32.mrb[0].mxu0
        %v1058 = vpop.f32.mrb[0].mxu0
        %v1059 = vadd.f32 %v964, %v1058
        %v1060 = vpop.f32.mrb[0].mxu0
        %1061 = vmatprep.mubr.bf16.mxu0 0
        %1062 = vmatmul.mubr.bf16.gmra.mrb[0].mxu0 %v941
        %v1063 = vpop.f32.mrb[0].mxu0
        %v1064 = vadd.f32 %v964, %v1063
        %v1065 = vpop.f32.mrb[0].mxu0
        %v1066 = vpop.f32.mrb[0].mxu0
        %v1067 = vadd.f32 %v964, %v1066
        %v1068 = vpop.f32.mrb[0].mxu0
        %1069 = vmatprep.mubr.bf16.mxu0 0
        %1070 = vmatmul.mubr.bf16.gmra.mrb[0].mxu0 %v942
        %v1071 = vpop.f32.mrb[0].mxu0
        %v1072 = vadd.f32 %v964, %v1071
        %v1073 = vpop.f32.mrb[0].mxu0
        %v1074 = vpop.f32.mrb[0].mxu0
        %v1075 = vadd.f32 %v964, %v1074
        %v1076 = vpop.f32.mrb[0].mxu0
        %1077 = vdwg.mxu0
        %v1078 = vmax.f32 %v1048, 0.0
        %v1079 = vmax.f32 %v1051, 0.0
        %v1080 = vmax.f32 %v1056, 0.0
        %v1081 = vmax.f32 %v1059, 0.0
        %v1082 = vmax.f32 %v1064, 0.0
        %v1083 = vmax.f32 %v1067, 0.0
        %v1084 = vmax.f32 %v1072, 0.0
        %v1085 = vmax.f32 %v1075, 0.0
        %v1086 = vmin.f32 %v1048, 0.0
        %v1087 = vmin.f32 %v1051, 0.0
        %v1088 = vmin.f32 %v1056, 0.0
        %v1089 = vmin.f32 %v1059, 0.0
        %v1090 = vmin.f32 %v1064, 0.0
        %v1091 = vmin.f32 %v1067, 0.0
        %v1092 = vmin.f32 %v1072, 0.0
        %v1093 = vmin.f32 %v1075, 0.0
        %v1094 = vmul.f32 %v1086, 1.442695
        %v1095 = vpow.pop %v1094
        %v1096 = vmul.f32 %v1087, 1.442695
        %v1097 = vpow.pop %v1096
        %v1098 = vmul.f32 %v1088, 1.442695
        %v1099 = vpow.pop %v1098
        %v1100 = vmul.f32 %v1089, 1.442695
        %v1101 = vpow.pop %v1100
        %v1102 = vmul.f32 %v1090, 1.442695
        %v1103 = vpow.pop %v1102
        %v1104 = vmul.f32 %v1091, 1.442695
        %v1105 = vpow.pop %v1104
        %v1106 = vmul.f32 %v1092, 1.442695
        %v1107 = vpow.pop %v1106
        %v1108 = vmul.f32 %v1093, 1.442695
        %v1109 = vpow.pop %v1108
        %v1110 = vsub.f32 %v1095, 1.0
        %v1111 = vsub.f32 %v1097, 1.0
        %v1112 = vsub.f32 %v1099, 1.0
        %v1113 = vsub.f32 %v1101, 1.0
        %v1114 = vsub.f32 %v1103, 1.0
        %v1115 = vsub.f32 %v1105, 1.0
        %v1116 = vsub.f32 %v1107, 1.0
        %v1117 = vsub.f32 %v1109, 1.0
        %v1118 = vmul.f32 %v1110, 1.6732632
        %v1119 = vmul.f32 %v1111, 1.6732632
        %v1120 = vmul.f32 %v1112, 1.6732632
        %v1121 = vmul.f32 %v1113, 1.6732632
        %v1122 = vmul.f32 %v1114, 1.6732632
        %v1123 = vmul.f32 %v1115, 1.6732632
        %v1124 = vmul.f32 %v1116, 1.6732632
        %v1125 = vmul.f32 %v1117, 1.6732632
        %v1126 = vadd.f32 %v1078, %v1118
        %v1127 = vadd.f32 %v1079, %v1119
        %v1128 = vadd.f32 %v1080, %v1120
        %v1129 = vadd.f32 %v1081, %v1121
        %v1130 = vadd.f32 %v1082, %v1122
        %v1131 = vadd.f32 %v1083, %v1123
        %v1132 = vadd.f32 %v1084, %v1124
        %v1133 = vadd.f32 %v1085, %v1125
        %v1134 = vmul.f32 %v1126, 1.050701
        %v1135 = vmul.f32 %v1127, 1.050701
        %v1136 = vmul.f32 %v1128, 1.050701
        %v1137 = vmul.f32 %v1129, 1.050701
        %v1138 = vmul.f32 %v1130, 1.050701
        %v1139 = vmul.f32 %v1131, 1.050701
        %v1140 = vmul.f32 %v1132, 1.050701
        %v1141 = vmul.f32 %v1133, 1.050701
        %v1142 = vpack.c.bf16 %v1135, %v1134
        %v1143 = vpack.c.bf16 %v1137, %v1136
        %v1144 = vpack.c.bf16 %v1139, %v1138
        %v1145 = vpack.c.bf16 %v1141, %v1140
        %s1146 = scalar_lea.vmem %s3, 256
        %v1147 = vld [vmem:[%s1146] sm:$0xf]
        %v1148 = vld [vmem:[%s1146 + $0x4] sm:$0xf]
        %v1149 = vld [vmem:[%s1146 + $0x8] sm:$0xf]
        %v1150 = vld [vmem:[%s1146 + $0xc] sm:$0xf]
        %v1151 = vld [vmem:[%s1146 + $0x10] sm:$0xf]
        %v1152 = vld [vmem:[%s1146 + $0x14] sm:$0xf]
        %v1153 = vld [vmem:[%s1146 + $0x18] sm:$0xf]
        %v1154 = vld [vmem:[%s1146 + $0x1c] sm:$0xf]
        %v1155 = vld [vmem:[%s1146 + $0x20] sm:$0xf]
        %v1156 = vld [vmem:[%s1146 + $0x24] sm:$0xf]
        %v1157 = vld [vmem:[%s1146 + $0x28] sm:$0xf]
        %v1158 = vld [vmem:[%s1146 + $0x2c] sm:$0xf]
        %v1159 = vld [vmem:[%s1146 + $0x30] sm:$0xf]
        %v1160 = vld [vmem:[%s1146 + $0x34] sm:$0xf]
        %v1161 = vld [vmem:[%s1146 + $0x38] sm:$0xf]
        %v1162 = vld [vmem:[%s1146 + $0x3c] sm:$0xf]
        %v1163 = vld [vmem:[%s2 + $0x4] sm:$0x1]
        %v1164 = vlaneseq
        %v1165 = vshrl.u32 %v1164, 7
        %v1166 = vsub.s32 0, %v1165
        %v1167 = vrot.slane %v1163, %v1166
        %v1184 = vunpack.c.l.b16 %v1147
        %v1185 = vunpack.c.l.b16 %v1148
        %v1186 = vunpack.c.l.b16 %v1149
        %v1187 = vunpack.c.l.b16 %v1150
        %v1188 = vunpack.c.l.b16 %v1151
        %v1189 = vunpack.c.l.b16 %v1152
        %v1190 = vunpack.c.l.b16 %v1153
        %v1191 = vunpack.c.l.b16 %v1154
        %v1192 = vunpack.c.l.b16 %v1155
        %v1193 = vunpack.c.l.b16 %v1156
        %v1194 = vunpack.c.l.b16 %v1157
        %v1195 = vunpack.c.l.b16 %v1158
        %v1196 = vunpack.c.l.b16 %v1159
        %v1197 = vunpack.c.l.b16 %v1160
        %v1198 = vunpack.c.l.b16 %v1161
        %v1199 = vunpack.c.l.b16 %v1162
        %v1200 = vpack.c.b16 %v1185, %v1184
        %v1201 = vpack.c.b16 %v1187, %v1186
        %v1202 = vpack.c.b16 %v1189, %v1188
        %v1203 = vpack.c.b16 %v1191, %v1190
        %v1204 = vpack.c.b16 %v1193, %v1192
        %v1205 = vpack.c.b16 %v1195, %v1194
        %v1206 = vpack.c.b16 %v1197, %v1196
        %v1207 = vpack.c.b16 %v1199, %v1198
        %1216 = vmatprep.subr.bf16.mxu0 0
        %1217 = vmatpush1.bf16.msra.mxu0 %v1200
        %1218 = vmatprep.subr.bf16.mxu0 0
        %1219 = vmatpush1.bf16.msra.mxu0 %v1201
        %1220 = vmatprep.subr.bf16.mxu0 0
        %1221 = vmatpush1.bf16.msra.mxu0 %v1202
        %1222 = vmatprep.subr.bf16.mxu0 0
        %1223 = vmatpush1.bf16.msra.mxu0 %v1203
        %1224 = vmatprep.subr.bf16.mxu0 0
        %1225 = vmatpush1.bf16.msra.mxu0 %v1204
        %1226 = vmatprep.subr.bf16.mxu0 0
        %1227 = vmatpush1.bf16.msra.mxu0 %v1205
        %1228 = vmatprep.subr.bf16.mxu0 0
        %1229 = vmatpush1.bf16.msra.mxu0 %v1206
        %1230 = vmatprep.subr.bf16.mxu0 0
        %1231 = vmatpush1.bf16.msra.mxu0 %v1207
        %1232 = vmatprep.subr.bf16.mxu0 0
        %1233 = vmatpush1.bf16.msra.mxu0 0
        %1234 = vmatprep.subr.bf16.mxu0 0
        %1235 = vmatpush1.bf16.msra.mxu0 0
        %1236 = vmatprep.subr.bf16.mxu0 0
        %1237 = vmatpush1.bf16.msra.mxu0 0
        %1238 = vmatprep.subr.bf16.mxu0 0
        %1239 = vmatpush1.bf16.msra.mxu0 0
        %1240 = vmatprep.subr.bf16.mxu0 0
        %1241 = vmatpush1.bf16.msra.mxu0 0
        %1242 = vmatprep.subr.bf16.mxu0 0
        %1243 = vmatpush1.bf16.msra.mxu0 0
        %1244 = vmatprep.subr.bf16.mxu0 0
        %1245 = vmatpush1.bf16.msra.mxu0 0
        %1246 = vmatprep.subr.bf16.mxu0 0
        %1247 = vmatpush1.bf16.msra.mxu0 0
        %1248 = vmatprep.mubr.bf16.mxu0 0
        %1249 = vmatmul.mubr.bf16.gmra.mrb[0].mxu0 %v1142
        %v1250 = vpop.f32.mrb[0].mxu0
        %v1251 = vadd.f32 %v1167, %v1250
        %v1252 = vpop.f32.mrb[0].mxu0
        %v1253 = vpop.f32.mrb[0].mxu0
        %v1254 = vadd.f32 %v1167, %v1253
        %v1255 = vpop.f32.mrb[0].mxu0
        %1256 = vmatprep.mubr.bf16.mxu0 0
        %1257 = vmatmul.mubr.bf16.gmra.mrb[0].mxu0 %v1143
        %v1258 = vpop.f32.mrb[0].mxu0
        %v1259 = vadd.f32 %v1167, %v1258
        %v1260 = vpop.f32.mrb[0].mxu0
        %v1261 = vpop.f32.mrb[0].mxu0
        %v1262 = vadd.f32 %v1167, %v1261
        %v1263 = vpop.f32.mrb[0].mxu0
        %1264 = vmatprep.mubr.bf16.mxu0 0
        %1265 = vmatmul.mubr.bf16.gmra.mrb[0].mxu0 %v1144
        %v1266 = vpop.f32.mrb[0].mxu0
        %v1267 = vadd.f32 %v1167, %v1266
        %v1268 = vpop.f32.mrb[0].mxu0
        %v1269 = vpop.f32.mrb[0].mxu0
        %v1270 = vadd.f32 %v1167, %v1269
        %v1271 = vpop.f32.mrb[0].mxu0
        %1272 = vmatprep.mubr.bf16.mxu0 0
        %1273 = vmatmul.mubr.bf16.gmra.mrb[0].mxu0 %v1145
        %v1274 = vpop.f32.mrb[0].mxu0
        %v1275 = vadd.f32 %v1167, %v1274
        %v1276 = vpop.f32.mrb[0].mxu0
        %v1277 = vpop.f32.mrb[0].mxu0
        %v1278 = vadd.f32 %v1167, %v1277
        %v1279 = vpop.f32.mrb[0].mxu0
        %1280 = vdwg.mxu0
        %s1281 = scalar_lea.vmem %s3, 320
        %v1282 = vld [vmem:[%s1281] sm:$0xf]
        %v1283 = vld [vmem:[%s1281 + $0x4] sm:$0xf]
        %v1284 = vld [vmem:[%s1281 + $0x8] sm:$0xf]
        %v1285 = vld [vmem:[%s1281 + $0xc] sm:$0xf]
        %v1286 = vld [vmem:[%s1281 + $0x10] sm:$0xf]
        %v1287 = vld [vmem:[%s1281 + $0x14] sm:$0xf]
        %v1288 = vld [vmem:[%s1281 + $0x18] sm:$0xf]
        %v1289 = vld [vmem:[%s1281 + $0x1c] sm:$0xf]
        %v1290 = vld [vmem:[%s1281 + $0x20] sm:$0xf]
        %v1291 = vld [vmem:[%s1281 + $0x24] sm:$0xf]
        %v1292 = vld [vmem:[%s1281 + $0x28] sm:$0xf]
        %v1293 = vld [vmem:[%s1281 + $0x2c] sm:$0xf]
        %v1294 = vld [vmem:[%s1281 + $0x30] sm:$0xf]
        %v1295 = vld [vmem:[%s1281 + $0x34] sm:$0xf]
        %v1296 = vld [vmem:[%s1281 + $0x38] sm:$0xf]
        %v1297 = vld [vmem:[%s1281 + $0x3c] sm:$0xf]
        %v1298 = vld [vmem:[%s2 + $0x5] sm:$0x1]
        %v1299 = vlaneseq
        %v1300 = vshrl.u32 %v1299, 7
        %v1301 = vsub.s32 0, %v1300
        %v1302 = vrot.slane %v1298, %v1301
        %v1319 = vunpack.c.l.b16 %v1282
        %v1320 = vunpack.c.l.b16 %v1283
        %v1321 = vunpack.c.l.b16 %v1284
        %v1322 = vunpack.c.l.b16 %v1285
        %v1323 = vunpack.c.l.b16 %v1286
        %v1324 = vunpack.c.l.b16 %v1287
        %v1325 = vunpack.c.l.b16 %v1288
        %v1326 = vunpack.c.l.b16 %v1289
        %v1327 = vunpack.c.l.b16 %v1290
        %v1328 = vunpack.c.l.b16 %v1291
        %v1329 = vunpack.c.l.b16 %v1292
        %v1330 = vunpack.c.l.b16 %v1293
        %v1331 = vunpack.c.l.b16 %v1294
        %v1332 = vunpack.c.l.b16 %v1295
        %v1333 = vunpack.c.l.b16 %v1296
        %v1334 = vunpack.c.l.b16 %v1297
        %v1335 = vpack.c.b16 %v1320, %v1319
        %v1336 = vpack.c.b16 %v1322, %v1321
        %v1337 = vpack.c.b16 %v1324, %v1323
        %v1338 = vpack.c.b16 %v1326, %v1325
        %v1339 = vpack.c.b16 %v1328, %v1327
        %v1340 = vpack.c.b16 %v1330, %v1329
        %v1341 = vpack.c.b16 %v1332, %v1331
        %v1342 = vpack.c.b16 %v1334, %v1333
        %1351 = vmatprep.subr.bf16.mxu0 0
        %1352 = vmatpush1.bf16.msra.mxu0 %v1335
        %1353 = vmatprep.subr.bf16.mxu0 0
        %1354 = vmatpush1.bf16.msra.mxu0 %v1336
        %1355 = vmatprep.subr.bf16.mxu0 0
        %1356 = vmatpush1.bf16.msra.mxu0 %v1337
        %1357 = vmatprep.subr.bf16.mxu0 0
        %1358 = vmatpush1.bf16.msra.mxu0 %v1338
        %1359 = vmatprep.subr.bf16.mxu0 0
        %1360 = vmatpush1.bf16.msra.mxu0 %v1339
        %1361 = vmatprep.subr.bf16.mxu0 0
        %1362 = vmatpush1.bf16.msra.mxu0 %v1340
        %1363 = vmatprep.subr.bf16.mxu0 0
        %1364 = vmatpush1.bf16.msra.mxu0 %v1341
        %1365 = vmatprep.subr.bf16.mxu0 0
        %1366 = vmatpush1.bf16.msra.mxu0 %v1342
        %1367 = vmatprep.subr.bf16.mxu0 0
        %1368 = vmatpush1.bf16.msra.mxu0 0
        %1369 = vmatprep.subr.bf16.mxu0 0
        %1370 = vmatpush1.bf16.msra.mxu0 0
        %1371 = vmatprep.subr.bf16.mxu0 0
        %1372 = vmatpush1.bf16.msra.mxu0 0
        %1373 = vmatprep.subr.bf16.mxu0 0
        %1374 = vmatpush1.bf16.msra.mxu0 0
        %1375 = vmatprep.subr.bf16.mxu0 0
        %1376 = vmatpush1.bf16.msra.mxu0 0
        %1377 = vmatprep.subr.bf16.mxu0 0
        %1378 = vmatpush1.bf16.msra.mxu0 0
        %1379 = vmatprep.subr.bf16.mxu0 0
        %1380 = vmatpush1.bf16.msra.mxu0 0
        %1381 = vmatprep.subr.bf16.mxu0 0
        %1382 = vmatpush1.bf16.msra.mxu0 0
        %1383 = vmatprep.mubr.bf16.mxu0 0
        %1384 = vmatmul.mubr.bf16.gmra.mrb[0].mxu0 %v1142
        %v1385 = vpop.f32.mrb[0].mxu0
        %v1386 = vadd.f32 %v1302, %v1385
        %v1387 = vpop.f32.mrb[0].mxu0
        %v1388 = vpop.f32.mrb[0].mxu0
        %v1389 = vadd.f32 %v1302, %v1388
        %v1390 = vpop.f32.mrb[0].mxu0
        %1391 = vmatprep.mubr.bf16.mxu0 0
        %1392 = vmatmul.mubr.bf16.gmra.mrb[0].mxu0 %v1143
        %v1393 = vpop.f32.mrb[0].mxu0
        %v1394 = vadd.f32 %v1302, %v1393
        %v1395 = vpop.f32.mrb[0].mxu0
        %v1396 = vpop.f32.mrb[0].mxu0
        %v1397 = vadd.f32 %v1302, %v1396
        %v1398 = vpop.f32.mrb[0].mxu0
        %1399 = vmatprep.mubr.bf16.mxu0 0
        %1400 = vmatmul.mubr.bf16.gmra.mrb[0].mxu0 %v1144
        %v1401 = vpop.f32.mrb[0].mxu0
        %v1402 = vadd.f32 %v1302, %v1401
        %v1403 = vpop.f32.mrb[0].mxu0
        %v1404 = vpop.f32.mrb[0].mxu0
        %v1405 = vadd.f32 %v1302, %v1404
        %v1406 = vpop.f32.mrb[0].mxu0
        %1407 = vmatprep.mubr.bf16.mxu0 0
        %1408 = vmatmul.mubr.bf16.gmra.mrb[0].mxu0 %v1145
        %v1409 = vpop.f32.mrb[0].mxu0
        %v1410 = vadd.f32 %v1302, %v1409
        %v1411 = vpop.f32.mrb[0].mxu0
        %v1412 = vpop.f32.mrb[0].mxu0
        %v1413 = vadd.f32 %v1302, %v1412
        %v1414 = vpop.f32.mrb[0].mxu0
        %1415 = vdwg.mxu0
        %1416 = vst [vmem:[%s294] sm:$0xff] %v1251
        %1417 = vst [vmem:[%s294 + $0x8] sm:$0xff] %v1254
        %1418 = vst [vmem:[%s294 + $0x10] sm:$0xff] %v1259
        %1419 = vst [vmem:[%s294 + $0x18] sm:$0xff] %v1262
        %1420 = vst [vmem:[%s294 + $0x20] sm:$0xff] %v1267
        %1421 = vst [vmem:[%s294 + $0x28] sm:$0xff] %v1270
        %1422 = vst [vmem:[%s294 + $0x30] sm:$0xff] %v1275
        %1423 = vst [vmem:[%s294 + $0x38] sm:$0xff] %v1278
        %1424 = vst [vmem:[%s300] sm:$0xff] %v1386
        %1425 = vst [vmem:[%s300 + $0x8] sm:$0xff] %v1389
        %1426 = vst [vmem:[%s300 + $0x10] sm:$0xff] %v1394
        %1427 = vst [vmem:[%s300 + $0x18] sm:$0xff] %v1397
        %1428 = vst [vmem:[%s300 + $0x20] sm:$0xff] %v1402
        %1429 = vst [vmem:[%s300 + $0x28] sm:$0xff] %v1405
        %1430 = vst [vmem:[%s300 + $0x30] sm:$0xff] %v1410
        %1431 = vst [vmem:[%s300 + $0x38] sm:$0xff] %v1413
        %v1432 = vld [vmem:[%s287] sm:$0xff]
        %v1433 = vld [vmem:[%s287 + $0x8] sm:$0xff]
        %v1434 = vld [vmem:[%s287 + $0x10] sm:$0xff]
        %v1435 = vld [vmem:[%s287 + $0x18] sm:$0xff]
        %v1436 = vld [vmem:[%s287 + $0x20] sm:$0xff]
        %v1437 = vld [vmem:[%s287 + $0x28] sm:$0xff]
        %v1438 = vld [vmem:[%s287 + $0x30] sm:$0xff]
        %v1439 = vld [vmem:[%s287 + $0x38] sm:$0xff]
        %v1440 = vmul.f32 %v1386, %v1432
        %v1441 = vmul.f32 %v1389, %v1433
        %v1442 = vmul.f32 %v1394, %v1434
        %v1443 = vmul.f32 %v1397, %v1435
        %v1444 = vmul.f32 %v1402, %v1436
        %v1445 = vmul.f32 %v1405, %v1437
        %v1446 = vmul.f32 %v1410, %v1438
        %v1447 = vmul.f32 %v1413, %v1439
        %v1448 = vadd.f32 %v1251, %v1440
        %v1449 = vadd.f32 %v1254, %v1441
        %v1450 = vadd.f32 %v1259, %v1442
        %v1451 = vadd.f32 %v1262, %v1443
        %v1452 = vadd.f32 %v1267, %v1444
        %v1453 = vadd.f32 %v1270, %v1445
        %v1454 = vadd.f32 %v1275, %v1446
        %v1455 = vadd.f32 %v1278, %v1447
        %v1456 = vpack.c.bf16 %v1449, %v1448
        %v1457 = vpack.c.bf16 %v1451, %v1450
        %v1458 = vpack.c.bf16 %v1453, %v1452
        %v1459 = vpack.c.bf16 %v1455, %v1454
        %s1460 = scalar_lea.vmem %s3, 384
        %v1461 = vld [vmem:[%s1460] sm:$0xf]
        %v1462 = vld [vmem:[%s1460 + $0x4] sm:$0xf]
        %v1463 = vld [vmem:[%s1460 + $0x8] sm:$0xf]
        %v1464 = vld [vmem:[%s1460 + $0xc] sm:$0xf]
        %v1465 = vld [vmem:[%s1460 + $0x10] sm:$0xf]
        %v1466 = vld [vmem:[%s1460 + $0x14] sm:$0xf]
        %v1467 = vld [vmem:[%s1460 + $0x18] sm:$0xf]
        %v1468 = vld [vmem:[%s1460 + $0x1c] sm:$0xf]
        %v1469 = vld [vmem:[%s1460 + $0x20] sm:$0xf]
        %v1470 = vld [vmem:[%s1460 + $0x24] sm:$0xf]
        %v1471 = vld [vmem:[%s1460 + $0x28] sm:$0xf]
        %v1472 = vld [vmem:[%s1460 + $0x2c] sm:$0xf]
        %v1473 = vld [vmem:[%s1460 + $0x30] sm:$0xf]
        %v1474 = vld [vmem:[%s1460 + $0x34] sm:$0xf]
        %v1475 = vld [vmem:[%s1460 + $0x38] sm:$0xf]
        %v1476 = vld [vmem:[%s1460 + $0x3c] sm:$0xf]
        %v1477 = vld [vmem:[%s2 + $0x6] sm:$0x1]
        %v1478 = vlaneseq
        %v1479 = vshrl.u32 %v1478, 7
        %v1480 = vsub.s32 0, %v1479
        %v1481 = vrot.slane %v1477, %v1480
        %v1498 = vunpack.c.l.b16 %v1461
        %v1499 = vunpack.c.l.b16 %v1462
        %v1500 = vunpack.c.l.b16 %v1463
        %v1501 = vunpack.c.l.b16 %v1464
        %v1502 = vunpack.c.l.b16 %v1465
        %v1503 = vunpack.c.l.b16 %v1466
        %v1504 = vunpack.c.l.b16 %v1467
        %v1505 = vunpack.c.l.b16 %v1468
        %v1506 = vunpack.c.l.b16 %v1469
        %v1507 = vunpack.c.l.b16 %v1470
        %v1508 = vunpack.c.l.b16 %v1471
        %v1509 = vunpack.c.l.b16 %v1472
        %v1510 = vunpack.c.l.b16 %v1473
        %v1511 = vunpack.c.l.b16 %v1474
        %v1512 = vunpack.c.l.b16 %v1475
        %v1513 = vunpack.c.l.b16 %v1476
        %v1514 = vpack.c.b16 %v1499, %v1498
        %v1515 = vpack.c.b16 %v1501, %v1500
        %v1516 = vpack.c.b16 %v1503, %v1502
        %v1517 = vpack.c.b16 %v1505, %v1504
        %v1518 = vpack.c.b16 %v1507, %v1506
        %v1519 = vpack.c.b16 %v1509, %v1508
        %v1520 = vpack.c.b16 %v1511, %v1510
        %v1521 = vpack.c.b16 %v1513, %v1512
        %1530 = vmatprep.subr.bf16.mxu0 0
        %1531 = vmatpush1.bf16.msra.mxu0 %v1514
        %1532 = vmatprep.subr.bf16.mxu0 0
        %1533 = vmatpush1.bf16.msra.mxu0 %v1515
        %1534 = vmatprep.subr.bf16.mxu0 0
        %1535 = vmatpush1.bf16.msra.mxu0 %v1516
        %1536 = vmatprep.subr.bf16.mxu0 0
        %1537 = vmatpush1.bf16.msra.mxu0 %v1517
        %1538 = vmatprep.subr.bf16.mxu0 0
        %1539 = vmatpush1.bf16.msra.mxu0 %v1518
        %1540 = vmatprep.subr.bf16.mxu0 0
        %1541 = vmatpush1.bf16.msra.mxu0 %v1519
        %1542 = vmatprep.subr.bf16.mxu0 0
        %1543 = vmatpush1.bf16.msra.mxu0 %v1520
        %1544 = vmatprep.subr.bf16.mxu0 0
        %1545 = vmatpush1.bf16.msra.mxu0 %v1521
        %1546 = vmatprep.subr.bf16.mxu0 0
        %1547 = vmatpush1.bf16.msra.mxu0 0
        %1548 = vmatprep.subr.bf16.mxu0 0
        %1549 = vmatpush1.bf16.msra.mxu0 0
        %1550 = vmatprep.subr.bf16.mxu0 0
        %1551 = vmatpush1.bf16.msra.mxu0 0
        %1552 = vmatprep.subr.bf16.mxu0 0
        %1553 = vmatpush1.bf16.msra.mxu0 0
        %1554 = vmatprep.subr.bf16.mxu0 0
        %1555 = vmatpush1.bf16.msra.mxu0 0
        %1556 = vmatprep.subr.bf16.mxu0 0
        %1557 = vmatpush1.bf16.msra.mxu0 0
        %1558 = vmatprep.subr.bf16.mxu0 0
        %1559 = vmatpush1.bf16.msra.mxu0 0
        %1560 = vmatprep.subr.bf16.mxu0 0
        %1561 = vmatpush1.bf16.msra.mxu0 0
        %1562 = vmatprep.mubr.bf16.mxu0 0
        %1563 = vmatmul.mubr.bf16.gmra.mrb[0].mxu0 %v1456
        %v1564 = vpop.f32.mrb[0].mxu0
        %v1565 = vadd.f32 %v1481, %v1564
        %v1566 = vpop.f32.mrb[0].mxu0
        %v1567 = vpop.f32.mrb[0].mxu0
        %v1568 = vadd.f32 %v1481, %v1567
        %v1569 = vpop.f32.mrb[0].mxu0
        %1570 = vmatprep.mubr.bf16.mxu0 0
        %1571 = vmatmul.mubr.bf16.gmra.mrb[0].mxu0 %v1457
        %v1572 = vpop.f32.mrb[0].mxu0
        %v1573 = vadd.f32 %v1481, %v1572
        %v1574 = vpop.f32.mrb[0].mxu0
        %v1575 = vpop.f32.mrb[0].mxu0
        %v1576 = vadd.f32 %v1481, %v1575
        %v1577 = vpop.f32.mrb[0].mxu0
        %1578 = vmatprep.mubr.bf16.mxu0 0
        %1579 = vmatmul.mubr.bf16.gmra.mrb[0].mxu0 %v1458
        %v1580 = vpop.f32.mrb[0].mxu0
        %v1581 = vadd.f32 %v1481, %v1580
        %v1582 = vpop.f32.mrb[0].mxu0
        %v1583 = vpop.f32.mrb[0].mxu0
        %v1584 = vadd.f32 %v1481, %v1583
        %v1585 = vpop.f32.mrb[0].mxu0
        %1586 = vmatprep.mubr.bf16.mxu0 0
        %1587 = vmatmul.mubr.bf16.gmra.mrb[0].mxu0 %v1459
        %v1588 = vpop.f32.mrb[0].mxu0
        %v1589 = vadd.f32 %v1481, %v1588
        %v1590 = vpop.f32.mrb[0].mxu0
        %v1591 = vpop.f32.mrb[0].mxu0
        %v1592 = vadd.f32 %v1481, %v1591
        %v1593 = vpop.f32.mrb[0].mxu0
        %1594 = vdwg.mxu0
        %v1595 = vmax.f32 %v1565, 0.0
        %v1596 = vmax.f32 %v1568, 0.0
        %v1597 = vmax.f32 %v1573, 0.0
        %v1598 = vmax.f32 %v1576, 0.0
        %v1599 = vmax.f32 %v1581, 0.0
        %v1600 = vmax.f32 %v1584, 0.0
        %v1601 = vmax.f32 %v1589, 0.0
        %v1602 = vmax.f32 %v1592, 0.0
        %v1603 = vmin.f32 %v1565, 0.0
        %v1604 = vmin.f32 %v1568, 0.0
        %v1605 = vmin.f32 %v1573, 0.0
        %v1606 = vmin.f32 %v1576, 0.0
        %v1607 = vmin.f32 %v1581, 0.0
        %v1608 = vmin.f32 %v1584, 0.0
        %v1609 = vmin.f32 %v1589, 0.0
        %v1610 = vmin.f32 %v1592, 0.0
        %v1611 = vmul.f32 %v1603, 1.442695
        %v1612 = vpow.pop %v1611
        %v1613 = vmul.f32 %v1604, 1.442695
        %v1614 = vpow.pop %v1613
        %v1615 = vmul.f32 %v1605, 1.442695
        %v1616 = vpow.pop %v1615
        %v1617 = vmul.f32 %v1606, 1.442695
        %v1618 = vpow.pop %v1617
        %v1619 = vmul.f32 %v1607, 1.442695
        %v1620 = vpow.pop %v1619
        %v1621 = vmul.f32 %v1608, 1.442695
        %v1622 = vpow.pop %v1621
        %v1623 = vmul.f32 %v1609, 1.442695
        %v1624 = vpow.pop %v1623
        %v1625 = vmul.f32 %v1610, 1.442695
        %v1626 = vpow.pop %v1625
        %v1627 = vsub.f32 %v1612, 1.0
        %v1628 = vsub.f32 %v1614, 1.0
        %v1629 = vsub.f32 %v1616, 1.0
        %v1630 = vsub.f32 %v1618, 1.0
        %v1631 = vsub.f32 %v1620, 1.0
        %v1632 = vsub.f32 %v1622, 1.0
        %v1633 = vsub.f32 %v1624, 1.0
        %v1634 = vsub.f32 %v1626, 1.0
        %v1635 = vmul.f32 %v1627, 1.6732632
        %v1636 = vmul.f32 %v1628, 1.6732632
        %v1637 = vmul.f32 %v1629, 1.6732632
        %v1638 = vmul.f32 %v1630, 1.6732632
        %v1639 = vmul.f32 %v1631, 1.6732632
        %v1640 = vmul.f32 %v1632, 1.6732632
        %v1641 = vmul.f32 %v1633, 1.6732632
        %v1642 = vmul.f32 %v1634, 1.6732632
        %v1643 = vadd.f32 %v1595, %v1635
        %v1644 = vadd.f32 %v1596, %v1636
        %v1645 = vadd.f32 %v1597, %v1637
        %v1646 = vadd.f32 %v1598, %v1638
        %v1647 = vadd.f32 %v1599, %v1639
        %v1648 = vadd.f32 %v1600, %v1640
        %v1649 = vadd.f32 %v1601, %v1641
        %v1650 = vadd.f32 %v1602, %v1642
        %v1651 = vmul.f32 %v1643, 1.050701
        %v1652 = vmul.f32 %v1644, 1.050701
        %v1653 = vmul.f32 %v1645, 1.050701
        %v1654 = vmul.f32 %v1646, 1.050701
        %v1655 = vmul.f32 %v1647, 1.050701
        %v1656 = vmul.f32 %v1648, 1.050701
        %v1657 = vmul.f32 %v1649, 1.050701
        %v1658 = vmul.f32 %v1650, 1.050701
        %v1659 = vpack.c.bf16 %v1652, %v1651
        %v1660 = vpack.c.bf16 %v1654, %v1653
        %v1661 = vpack.c.bf16 %v1656, %v1655
        %v1662 = vpack.c.bf16 %v1658, %v1657
        %s1663 = scalar_lea.vmem %s3, 448
        %v1664 = vld [vmem:[%s1663] sm:$0xf]
        %v1665 = vld [vmem:[%s1663 + $0x4] sm:$0xf]
        %v1666 = vld [vmem:[%s1663 + $0x8] sm:$0xf]
        %v1667 = vld [vmem:[%s1663 + $0xc] sm:$0xf]
        %v1668 = vld [vmem:[%s1663 + $0x10] sm:$0xf]
        %v1669 = vld [vmem:[%s1663 + $0x14] sm:$0xf]
        %v1670 = vld [vmem:[%s1663 + $0x18] sm:$0xf]
        %v1671 = vld [vmem:[%s1663 + $0x1c] sm:$0xf]
        %v1672 = vld [vmem:[%s1663 + $0x20] sm:$0xf]
        %v1673 = vld [vmem:[%s1663 + $0x24] sm:$0xf]
        %v1674 = vld [vmem:[%s1663 + $0x28] sm:$0xf]
        %v1675 = vld [vmem:[%s1663 + $0x2c] sm:$0xf]
        %v1676 = vld [vmem:[%s1663 + $0x30] sm:$0xf]
        %v1677 = vld [vmem:[%s1663 + $0x34] sm:$0xf]
        %v1678 = vld [vmem:[%s1663 + $0x38] sm:$0xf]
        %v1679 = vld [vmem:[%s1663 + $0x3c] sm:$0xf]
        %v1680 = vld [vmem:[%s2 + $0x7] sm:$0x1]
        %v1681 = vlaneseq
        %v1682 = vshrl.u32 %v1681, 7
        %v1683 = vsub.s32 0, %v1682
        %v1684 = vrot.slane %v1680, %v1683
        %v1701 = vunpack.c.l.b16 %v1664
        %v1702 = vunpack.c.l.b16 %v1665
        %v1703 = vunpack.c.l.b16 %v1666
        %v1704 = vunpack.c.l.b16 %v1667
        %v1705 = vunpack.c.l.b16 %v1668
        %v1706 = vunpack.c.l.b16 %v1669
        %v1707 = vunpack.c.l.b16 %v1670
        %v1708 = vunpack.c.l.b16 %v1671
        %v1709 = vunpack.c.l.b16 %v1672
        %v1710 = vunpack.c.l.b16 %v1673
        %v1711 = vunpack.c.l.b16 %v1674
        %v1712 = vunpack.c.l.b16 %v1675
        %v1713 = vunpack.c.l.b16 %v1676
        %v1714 = vunpack.c.l.b16 %v1677
        %v1715 = vunpack.c.l.b16 %v1678
        %v1716 = vunpack.c.l.b16 %v1679
        %v1717 = vpack.c.b16 %v1702, %v1701
        %v1718 = vpack.c.b16 %v1704, %v1703
        %v1719 = vpack.c.b16 %v1706, %v1705
        %v1720 = vpack.c.b16 %v1708, %v1707
        %v1721 = vpack.c.b16 %v1710, %v1709
        %v1722 = vpack.c.b16 %v1712, %v1711
        %v1723 = vpack.c.b16 %v1714, %v1713
        %v1724 = vpack.c.b16 %v1716, %v1715
        %1733 = vmatprep.subr.bf16.mxu0 0
        %1734 = vmatpush1.bf16.msra.mxu0 %v1717
        %1735 = vmatprep.subr.bf16.mxu0 0
        %1736 = vmatpush1.bf16.msra.mxu0 %v1718
        %1737 = vmatprep.subr.bf16.mxu0 0
        %1738 = vmatpush1.bf16.msra.mxu0 %v1719
        %1739 = vmatprep.subr.bf16.mxu0 0
        %1740 = vmatpush1.bf16.msra.mxu0 %v1720
        %1741 = vmatprep.subr.bf16.mxu0 0
        %1742 = vmatpush1.bf16.msra.mxu0 %v1721
        %1743 = vmatprep.subr.bf16.mxu0 0
        %1744 = vmatpush1.bf16.msra.mxu0 %v1722
        %1745 = vmatprep.subr.bf16.mxu0 0
        %1746 = vmatpush1.bf16.msra.mxu0 %v1723
        %1747 = vmatprep.subr.bf16.mxu0 0
        %1748 = vmatpush1.bf16.msra.mxu0 %v1724
        %1749 = vmatprep.subr.bf16.mxu0 0
        %1750 = vmatpush1.bf16.msra.mxu0 0
        %1751 = vmatprep.subr.bf16.mxu0 0
        %1752 = vmatpush1.bf16.msra.mxu0 0
        %1753 = vmatprep.subr.bf16.mxu0 0
        %1754 = vmatpush1.bf16.msra.mxu0 0
        %1755 = vmatprep.subr.bf16.mxu0 0
        %1756 = vmatpush1.bf16.msra.mxu0 0
        %1757 = vmatprep.subr.bf16.mxu0 0
        %1758 = vmatpush1.bf16.msra.mxu0 0
        %1759 = vmatprep.subr.bf16.mxu0 0
        %1760 = vmatpush1.bf16.msra.mxu0 0
        %1761 = vmatprep.subr.bf16.mxu0 0
        %1762 = vmatpush1.bf16.msra.mxu0 0
        %1763 = vmatprep.subr.bf16.mxu0 0
        %1764 = vmatpush1.bf16.msra.mxu0 0
        %1765 = vmatprep.mubr.bf16.mxu0 0
        %1766 = vmatmul.mubr.bf16.gmra.mrb[0].mxu0 %v1659
        %v1767 = vpop.f32.mrb[0].mxu0
        %v1768 = vadd.f32 %v1684, %v1767
        %v1769 = vpop.f32.mrb[0].mxu0
        %v1770 = vpop.f32.mrb[0].mxu0
        %v1771 = vadd.f32 %v1684, %v1770
        %v1772 = vpop.f32.mrb[0].mxu0
        %1773 = vmatprep.mubr.bf16.mxu0 0
        %1774 = vmatmul.mubr.bf16.gmra.mrb[0].mxu0 %v1660
        %v1775 = vpop.f32.mrb[0].mxu0
        %v1776 = vadd.f32 %v1684, %v1775
        %v1777 = vpop.f32.mrb[0].mxu0
        %v1778 = vpop.f32.mrb[0].mxu0
        %v1779 = vadd.f32 %v1684, %v1778
        %v1780 = vpop.f32.mrb[0].mxu0
        %1781 = vmatprep.mubr.bf16.mxu0 0
        %1782 = vmatmul.mubr.bf16.gmra.mrb[0].mxu0 %v1661
        %v1783 = vpop.f32.mrb[0].mxu0
        %v1784 = vadd.f32 %v1684, %v1783
        %v1785 = vpop.f32.mrb[0].mxu0
        %v1786 = vpop.f32.mrb[0].mxu0
        %v1787 = vadd.f32 %v1684, %v1786
        %v1788 = vpop.f32.mrb[0].mxu0
        %1789 = vmatprep.mubr.bf16.mxu0 0
        %1790 = vmatmul.mubr.bf16.gmra.mrb[0].mxu0 %v1662
        %v1791 = vpop.f32.mrb[0].mxu0
        %v1792 = vadd.f32 %v1684, %v1791
        %v1793 = vpop.f32.mrb[0].mxu0
        %v1794 = vpop.f32.mrb[0].mxu0
        %v1795 = vadd.f32 %v1684, %v1794
        %v1796 = vpop.f32.mrb[0].mxu0
        %1797 = vdwg.mxu0
        %v1798 = vmax.f32 %v1768, 0.0
        %v1799 = vmax.f32 %v1771, 0.0
        %v1800 = vmax.f32 %v1776, 0.0
        %v1801 = vmax.f32 %v1779, 0.0
        %v1802 = vmax.f32 %v1784, 0.0
        %v1803 = vmax.f32 %v1787, 0.0
        %v1804 = vmax.f32 %v1792, 0.0
        %v1805 = vmax.f32 %v1795, 0.0
        %v1806 = vmin.f32 %v1768, 0.0
        %v1807 = vmin.f32 %v1771, 0.0
        %v1808 = vmin.f32 %v1776, 0.0
        %v1809 = vmin.f32 %v1779, 0.0
        %v1810 = vmin.f32 %v1784, 0.0
        %v1811 = vmin.f32 %v1787, 0.0
        %v1812 = vmin.f32 %v1792, 0.0
        %v1813 = vmin.f32 %v1795, 0.0
        %v1814 = vmul.f32 %v1806, 1.442695
        %v1815 = vpow.pop %v1814
        %v1816 = vmul.f32 %v1807, 1.442695
        %v1817 = vpow.pop %v1816
        %v1818 = vmul.f32 %v1808, 1.442695
        %v1819 = vpow.pop %v1818
        %v1820 = vmul.f32 %v1809, 1.442695
        %v1821 = vpow.pop %v1820
        %v1822 = vmul.f32 %v1810, 1.442695
        %v1823 = vpow.pop %v1822
        %v1824 = vmul.f32 %v1811, 1.442695
        %v1825 = vpow.pop %v1824
        %v1826 = vmul.f32 %v1812, 1.442695
        %v1827 = vpow.pop %v1826
        %v1828 = vmul.f32 %v1813, 1.442695
        %v1829 = vpow.pop %v1828
        %v1830 = vsub.f32 %v1815, 1.0
        %v1831 = vsub.f32 %v1817, 1.0
        %v1832 = vsub.f32 %v1819, 1.0
        %v1833 = vsub.f32 %v1821, 1.0
        %v1834 = vsub.f32 %v1823, 1.0
        %v1835 = vsub.f32 %v1825, 1.0
        %v1836 = vsub.f32 %v1827, 1.0
        %v1837 = vsub.f32 %v1829, 1.0
        %v1838 = vmul.f32 %v1830, 1.6732632
        %v1839 = vmul.f32 %v1831, 1.6732632
        %v1840 = vmul.f32 %v1832, 1.6732632
        %v1841 = vmul.f32 %v1833, 1.6732632
        %v1842 = vmul.f32 %v1834, 1.6732632
        %v1843 = vmul.f32 %v1835, 1.6732632
        %v1844 = vmul.f32 %v1836, 1.6732632
        %v1845 = vmul.f32 %v1837, 1.6732632
        %v1846 = vadd.f32 %v1798, %v1838
        %v1847 = vadd.f32 %v1799, %v1839
        %v1848 = vadd.f32 %v1800, %v1840
        %v1849 = vadd.f32 %v1801, %v1841
        %v1850 = vadd.f32 %v1802, %v1842
        %v1851 = vadd.f32 %v1803, %v1843
        %v1852 = vadd.f32 %v1804, %v1844
        %v1853 = vadd.f32 %v1805, %v1845
        %v1854 = vmul.f32 %v1846, 1.050701
        %v1855 = vmul.f32 %v1847, 1.050701
        %v1856 = vmul.f32 %v1848, 1.050701
        %v1857 = vmul.f32 %v1849, 1.050701
        %v1858 = vmul.f32 %v1850, 1.050701
        %v1859 = vmul.f32 %v1851, 1.050701
        %v1860 = vmul.f32 %v1852, 1.050701
        %v1861 = vmul.f32 %v1853, 1.050701
        %v1862 = vpack.c.bf16 %v1855, %v1854
        %v1863 = vpack.c.bf16 %v1857, %v1856
        %v1864 = vpack.c.bf16 %v1859, %v1858
        %v1865 = vpack.c.bf16 %v1861, %v1860
        %s1866 = scalar_lea.vmem %s3, 512
        %v1867 = vld [vmem:[%s1866] sm:$0xf]
        %v1868 = vld [vmem:[%s1866 + $0x4] sm:$0xf]
        %v1869 = vld [vmem:[%s1866 + $0x8] sm:$0xf]
        %v1870 = vld [vmem:[%s1866 + $0xc] sm:$0xf]
        %v1871 = vld [vmem:[%s1866 + $0x10] sm:$0xf]
        %v1872 = vld [vmem:[%s1866 + $0x14] sm:$0xf]
        %v1873 = vld [vmem:[%s1866 + $0x18] sm:$0xf]
        %v1874 = vld [vmem:[%s1866 + $0x1c] sm:$0xf]
        %v1875 = vld [vmem:[%s1866 + $0x20] sm:$0xf]
        %v1876 = vld [vmem:[%s1866 + $0x24] sm:$0xf]
        %v1877 = vld [vmem:[%s1866 + $0x28] sm:$0xf]
        %v1878 = vld [vmem:[%s1866 + $0x2c] sm:$0xf]
        %v1879 = vld [vmem:[%s1866 + $0x30] sm:$0xf]
        %v1880 = vld [vmem:[%s1866 + $0x34] sm:$0xf]
        %v1881 = vld [vmem:[%s1866 + $0x38] sm:$0xf]
        %v1882 = vld [vmem:[%s1866 + $0x3c] sm:$0xf]
        %v1883 = vld [vmem:[%s2 + $0x8] sm:$0x1]
        %v1884 = vlaneseq
        %v1885 = vshrl.u32 %v1884, 7
        %v1886 = vsub.s32 0, %v1885
        %v1887 = vrot.slane %v1883, %v1886
        %v1904 = vunpack.c.l.b16 %v1867
        %v1905 = vunpack.c.l.b16 %v1868
        %v1906 = vunpack.c.l.b16 %v1869
        %v1907 = vunpack.c.l.b16 %v1870
        %v1908 = vunpack.c.l.b16 %v1871
        %v1909 = vunpack.c.l.b16 %v1872
        %v1910 = vunpack.c.l.b16 %v1873
        %v1911 = vunpack.c.l.b16 %v1874
        %v1912 = vunpack.c.l.b16 %v1875
        %v1913 = vunpack.c.l.b16 %v1876
        %v1914 = vunpack.c.l.b16 %v1877
        %v1915 = vunpack.c.l.b16 %v1878
        %v1916 = vunpack.c.l.b16 %v1879
        %v1917 = vunpack.c.l.b16 %v1880
        %v1918 = vunpack.c.l.b16 %v1881
        %v1919 = vunpack.c.l.b16 %v1882
        %v1920 = vpack.c.b16 %v1905, %v1904
        %v1921 = vpack.c.b16 %v1907, %v1906
        %v1922 = vpack.c.b16 %v1909, %v1908
        %v1923 = vpack.c.b16 %v1911, %v1910
        %v1924 = vpack.c.b16 %v1913, %v1912
        %v1925 = vpack.c.b16 %v1915, %v1914
        %v1926 = vpack.c.b16 %v1917, %v1916
        %v1927 = vpack.c.b16 %v1919, %v1918
        %1936 = vmatprep.subr.bf16.mxu0 0
        %1937 = vmatpush1.bf16.msra.mxu0 %v1920
        %1938 = vmatprep.subr.bf16.mxu0 0
        %1939 = vmatpush1.bf16.msra.mxu0 %v1921
        %1940 = vmatprep.subr.bf16.mxu0 0
        %1941 = vmatpush1.bf16.msra.mxu0 %v1922
        %1942 = vmatprep.subr.bf16.mxu0 0
        %1943 = vmatpush1.bf16.msra.mxu0 %v1923
        %1944 = vmatprep.subr.bf16.mxu0 0
        %1945 = vmatpush1.bf16.msra.mxu0 %v1924
        %1946 = vmatprep.subr.bf16.mxu0 0
        %1947 = vmatpush1.bf16.msra.mxu0 %v1925
        %1948 = vmatprep.subr.bf16.mxu0 0
        %1949 = vmatpush1.bf16.msra.mxu0 %v1926
        %1950 = vmatprep.subr.bf16.mxu0 0
        %1951 = vmatpush1.bf16.msra.mxu0 %v1927
        %1952 = vmatprep.subr.bf16.mxu0 0
        %1953 = vmatpush1.bf16.msra.mxu0 0
        %1954 = vmatprep.subr.bf16.mxu0 0
        %1955 = vmatpush1.bf16.msra.mxu0 0
        %1956 = vmatprep.subr.bf16.mxu0 0
        %1957 = vmatpush1.bf16.msra.mxu0 0
        %1958 = vmatprep.subr.bf16.mxu0 0
        %1959 = vmatpush1.bf16.msra.mxu0 0
        %1960 = vmatprep.subr.bf16.mxu0 0
        %1961 = vmatpush1.bf16.msra.mxu0 0
        %1962 = vmatprep.subr.bf16.mxu0 0
        %1963 = vmatpush1.bf16.msra.mxu0 0
        %1964 = vmatprep.subr.bf16.mxu0 0
        %1965 = vmatpush1.bf16.msra.mxu0 0
        %1966 = vmatprep.subr.bf16.mxu0 0
        %1967 = vmatpush1.bf16.msra.mxu0 0
        %1968 = vmatprep.mubr.bf16.mxu0 0
        %1969 = vmatmul.mubr.bf16.gmra.mrb[0].mxu0 %v1862
        %v1970 = vpop.f32.mrb[0].mxu0
        %v1971 = vadd.f32 %v1887, %v1970
        %v1972 = vpop.f32.mrb[0].mxu0
        %v1973 = vpop.f32.mrb[0].mxu0
        %v1974 = vadd.f32 %v1887, %v1973
        %v1975 = vpop.f32.mrb[0].mxu0
        %1976 = vmatprep.mubr.bf16.mxu0 0
        %1977 = vmatmul.mubr.bf16.gmra.mrb[0].mxu0 %v1863
        %v1978 = vpop.f32.mrb[0].mxu0
        %v1979 = vadd.f32 %v1887, %v1978
        %v1980 = vpop.f32.mrb[0].mxu0
        %v1981 = vpop.f32.mrb[0].mxu0
        %v1982 = vadd.f32 %v1887, %v1981
        %v1983 = vpop.f32.mrb[0].mxu0
        %1984 = vmatprep.mubr.bf16.mxu0 0
        %1985 = vmatmul.mubr.bf16.gmra.mrb[0].mxu0 %v1864
        %v1986 = vpop.f32.mrb[0].mxu0
        %v1987 = vadd.f32 %v1887, %v1986
        %v1988 = vpop.f32.mrb[0].mxu0
        %v1989 = vpop.f32.mrb[0].mxu0
        %v1990 = vadd.f32 %v1887, %v1989
        %v1991 = vpop.f32.mrb[0].mxu0
        %1992 = vmatprep.mubr.bf16.mxu0 0
        %1993 = vmatmul.mubr.bf16.gmra.mrb[0].mxu0 %v1865
        %v1994 = vpop.f32.mrb[0].mxu0
        %v1995 = vadd.f32 %v1887, %v1994
        %v1996 = vpop.f32.mrb[0].mxu0
        %v1997 = vpop.f32.mrb[0].mxu0
        %v1998 = vadd.f32 %v1887, %v1997
        %v1999 = vpop.f32.mrb[0].mxu0
        %2000 = vdwg.mxu0
        %v2001 = vmax.f32 %v1971, 0.0
        %v2002 = vmax.f32 %v1974, 0.0
        %v2003 = vmax.f32 %v1979, 0.0
        %v2004 = vmax.f32 %v1982, 0.0
        %v2005 = vmax.f32 %v1987, 0.0
        %v2006 = vmax.f32 %v1990, 0.0
        %v2007 = vmax.f32 %v1995, 0.0
        %v2008 = vmax.f32 %v1998, 0.0
        %v2009 = vmin.f32 %v1971, 0.0
        %v2010 = vmin.f32 %v1974, 0.0
        %v2011 = vmin.f32 %v1979, 0.0
        %v2012 = vmin.f32 %v1982, 0.0
        %v2013 = vmin.f32 %v1987, 0.0
        %v2014 = vmin.f32 %v1990, 0.0
        %v2015 = vmin.f32 %v1995, 0.0
        %v2016 = vmin.f32 %v1998, 0.0
        %v2017 = vmul.f32 %v2009, 1.442695
        %v2018 = vpow.pop %v2017
        %v2019 = vmul.f32 %v2010, 1.442695
        %v2020 = vpow.pop %v2019
        %v2021 = vmul.f32 %v2011, 1.442695
        %v2022 = vpow.pop %v2021
        %v2023 = vmul.f32 %v2012, 1.442695
        %v2024 = vpow.pop %v2023
        %v2025 = vmul.f32 %v2013, 1.442695
        %v2026 = vpow.pop %v2025
        %v2027 = vmul.f32 %v2014, 1.442695
        %v2028 = vpow.pop %v2027
        %v2029 = vmul.f32 %v2015, 1.442695
        %v2030 = vpow.pop %v2029
        %v2031 = vmul.f32 %v2016, 1.442695
        %v2032 = vpow.pop %v2031
        %v2033 = vsub.f32 %v2018, 1.0
        %v2034 = vsub.f32 %v2020, 1.0
        %v2035 = vsub.f32 %v2022, 1.0
        %v2036 = vsub.f32 %v2024, 1.0
        %v2037 = vsub.f32 %v2026, 1.0
        %v2038 = vsub.f32 %v2028, 1.0
        %v2039 = vsub.f32 %v2030, 1.0
        %v2040 = vsub.f32 %v2032, 1.0
        %v2041 = vmul.f32 %v2033, 1.6732632
        %v2042 = vmul.f32 %v2034, 1.6732632
        %v2043 = vmul.f32 %v2035, 1.6732632
        %v2044 = vmul.f32 %v2036, 1.6732632
        %v2045 = vmul.f32 %v2037, 1.6732632
        %v2046 = vmul.f32 %v2038, 1.6732632
        %v2047 = vmul.f32 %v2039, 1.6732632
        %v2048 = vmul.f32 %v2040, 1.6732632
        %v2049 = vadd.f32 %v2001, %v2041
        %v2050 = vadd.f32 %v2002, %v2042
        %v2051 = vadd.f32 %v2003, %v2043
        %v2052 = vadd.f32 %v2004, %v2044
        %v2053 = vadd.f32 %v2005, %v2045
        %v2054 = vadd.f32 %v2006, %v2046
        %v2055 = vadd.f32 %v2007, %v2047
        %v2056 = vadd.f32 %v2008, %v2048
        %v2057 = vmul.f32 %v2049, 1.050701
        %v2058 = vmul.f32 %v2050, 1.050701
        %v2059 = vmul.f32 %v2051, 1.050701
        %v2060 = vmul.f32 %v2052, 1.050701
        %v2061 = vmul.f32 %v2053, 1.050701
        %v2062 = vmul.f32 %v2054, 1.050701
        %v2063 = vmul.f32 %v2055, 1.050701
        %v2064 = vmul.f32 %v2056, 1.050701
        %v2065 = vpack.c.bf16 %v2058, %v2057
        %v2066 = vpack.c.bf16 %v2060, %v2059
        %v2067 = vpack.c.bf16 %v2062, %v2061
        %v2068 = vpack.c.bf16 %v2064, %v2063
        %s2069 = scalar_lea.vmem %s3, 576
        %v2070 = vld [vmem:[%s2069] sm:$0xf]
        %v2071 = vld [vmem:[%s2069 + $0x4] sm:$0xf]
        %v2072 = vld [vmem:[%s2069 + $0x8] sm:$0xf]
        %v2073 = vld [vmem:[%s2069 + $0xc] sm:$0xf]
        %v2074 = vld [vmem:[%s2069 + $0x10] sm:$0xf]
        %v2075 = vld [vmem:[%s2069 + $0x14] sm:$0xf]
        %v2076 = vld [vmem:[%s2069 + $0x18] sm:$0xf]
        %v2077 = vld [vmem:[%s2069 + $0x1c] sm:$0xf]
        %v2078 = vld [vmem:[%s2069 + $0x20] sm:$0xf]
        %v2079 = vld [vmem:[%s2069 + $0x24] sm:$0xf]
        %v2080 = vld [vmem:[%s2069 + $0x28] sm:$0xf]
        %v2081 = vld [vmem:[%s2069 + $0x2c] sm:$0xf]
        %v2082 = vld [vmem:[%s2069 + $0x30] sm:$0xf]
        %v2083 = vld [vmem:[%s2069 + $0x34] sm:$0xf]
        %v2084 = vld [vmem:[%s2069 + $0x38] sm:$0xf]
        %v2085 = vld [vmem:[%s2069 + $0x3c] sm:$0xf]
        %v2086 = vld [vmem:[%s2 + $0x9] sm:$0x1]
        %v2087 = vlaneseq
        %v2088 = vshrl.u32 %v2087, 7
        %v2089 = vsub.s32 0, %v2088
        %v2090 = vrot.slane %v2086, %v2089
        %v2107 = vunpack.c.l.b16 %v2070
        %v2108 = vunpack.c.l.b16 %v2071
        %v2109 = vunpack.c.l.b16 %v2072
        %v2110 = vunpack.c.l.b16 %v2073
        %v2111 = vunpack.c.l.b16 %v2074
        %v2112 = vunpack.c.l.b16 %v2075
        %v2113 = vunpack.c.l.b16 %v2076
        %v2114 = vunpack.c.l.b16 %v2077
        %v2115 = vunpack.c.l.b16 %v2078
        %v2116 = vunpack.c.l.b16 %v2079
        %v2117 = vunpack.c.l.b16 %v2080
        %v2118 = vunpack.c.l.b16 %v2081
        %v2119 = vunpack.c.l.b16 %v2082
        %v2120 = vunpack.c.l.b16 %v2083
        %v2121 = vunpack.c.l.b16 %v2084
        %v2122 = vunpack.c.l.b16 %v2085
        %v2123 = vpack.c.b16 %v2108, %v2107
        %v2124 = vpack.c.b16 %v2110, %v2109
        %v2125 = vpack.c.b16 %v2112, %v2111
        %v2126 = vpack.c.b16 %v2114, %v2113
        %v2127 = vpack.c.b16 %v2116, %v2115
        %v2128 = vpack.c.b16 %v2118, %v2117
        %v2129 = vpack.c.b16 %v2120, %v2119
        %v2130 = vpack.c.b16 %v2122, %v2121
        %2139 = vmatprep.subr.bf16.mxu0 0
        %2140 = vmatpush1.bf16.msra.mxu0 %v2123
        %2141 = vmatprep.subr.bf16.mxu0 0
        %2142 = vmatpush1.bf16.msra.mxu0 %v2124
        %2143 = vmatprep.subr.bf16.mxu0 0
        %2144 = vmatpush1.bf16.msra.mxu0 %v2125
        %2145 = vmatprep.subr.bf16.mxu0 0
        %2146 = vmatpush1.bf16.msra.mxu0 %v2126
        %2147 = vmatprep.subr.bf16.mxu0 0
        %2148 = vmatpush1.bf16.msra.mxu0 %v2127
        %2149 = vmatprep.subr.bf16.mxu0 0
        %2150 = vmatpush1.bf16.msra.mxu0 %v2128
        %2151 = vmatprep.subr.bf16.mxu0 0
        %2152 = vmatpush1.bf16.msra.mxu0 %v2129
        %2153 = vmatprep.subr.bf16.mxu0 0
        %2154 = vmatpush1.bf16.msra.mxu0 %v2130
        %2155 = vmatprep.subr.bf16.mxu0 0
        %2156 = vmatpush1.bf16.msra.mxu0 0
        %2157 = vmatprep.subr.bf16.mxu0 0
        %2158 = vmatpush1.bf16.msra.mxu0 0
        %2159 = vmatprep.subr.bf16.mxu0 0
        %2160 = vmatpush1.bf16.msra.mxu0 0
        %2161 = vmatprep.subr.bf16.mxu0 0
        %2162 = vmatpush1.bf16.msra.mxu0 0
        %2163 = vmatprep.subr.bf16.mxu0 0
        %2164 = vmatpush1.bf16.msra.mxu0 0
        %2165 = vmatprep.subr.bf16.mxu0 0
        %2166 = vmatpush1.bf16.msra.mxu0 0
        %2167 = vmatprep.subr.bf16.mxu0 0
        %2168 = vmatpush1.bf16.msra.mxu0 0
        %2169 = vmatprep.subr.bf16.mxu0 0
        %2170 = vmatpush1.bf16.msra.mxu0 0
        %2171 = vmatprep.mubr.bf16.mxu0 0
        %2172 = vmatmul.mubr.bf16.gmra.mrb[0].mxu0 %v2065
        %v2173 = vpop.f32.mrb[0].mxu0
        %v2174 = vadd.f32 %v2090, %v2173
        %v2175 = vpop.f32.mrb[0].mxu0
        %v2176 = vpop.f32.mrb[0].mxu0
        %v2177 = vadd.f32 %v2090, %v2176
        %v2178 = vpop.f32.mrb[0].mxu0
        %2179 = vmatprep.mubr.bf16.mxu0 0
        %2180 = vmatmul.mubr.bf16.gmra.mrb[0].mxu0 %v2066
        %v2181 = vpop.f32.mrb[0].mxu0
        %v2182 = vadd.f32 %v2090, %v2181
        %v2183 = vpop.f32.mrb[0].mxu0
        %v2184 = vpop.f32.mrb[0].mxu0
        %v2185 = vadd.f32 %v2090, %v2184
        %v2186 = vpop.f32.mrb[0].mxu0
        %2187 = vmatprep.mubr.bf16.mxu0 0
        %2188 = vmatmul.mubr.bf16.gmra.mrb[0].mxu0 %v2067
        %v2189 = vpop.f32.mrb[0].mxu0
        %v2190 = vadd.f32 %v2090, %v2189
        %v2191 = vpop.f32.mrb[0].mxu0
        %v2192 = vpop.f32.mrb[0].mxu0
        %v2193 = vadd.f32 %v2090, %v2192
        %v2194 = vpop.f32.mrb[0].mxu0
        %2195 = vmatprep.mubr.bf16.mxu0 0
        %2196 = vmatmul.mubr.bf16.gmra.mrb[0].mxu0 %v2068
        %v2197 = vpop.f32.mrb[0].mxu0
        %v2198 = vadd.f32 %v2090, %v2197
        %v2199 = vpop.f32.mrb[0].mxu0
        %v2200 = vpop.f32.mrb[0].mxu0
        %v2201 = vadd.f32 %v2090, %v2200
        %v2202 = vpop.f32.mrb[0].mxu0
        %2203 = vdwg.mxu0
        %v2204 = vmax.f32 %v2174, 0.0
        %v2205 = vmax.f32 %v2177, 0.0
        %v2206 = vmax.f32 %v2182, 0.0
        %v2207 = vmax.f32 %v2185, 0.0
        %v2208 = vmax.f32 %v2190, 0.0
        %v2209 = vmax.f32 %v2193, 0.0
        %v2210 = vmax.f32 %v2198, 0.0
        %v2211 = vmax.f32 %v2201, 0.0
        %v2212 = vmin.f32 %v2174, 0.0
        %v2213 = vmin.f32 %v2177, 0.0
        %v2214 = vmin.f32 %v2182, 0.0
        %v2215 = vmin.f32 %v2185, 0.0
        %v2216 = vmin.f32 %v2190, 0.0
        %v2217 = vmin.f32 %v2193, 0.0
        %v2218 = vmin.f32 %v2198, 0.0
        %v2219 = vmin.f32 %v2201, 0.0
        %v2220 = vmul.f32 %v2212, 1.442695
        %v2221 = vpow.pop %v2220
        %v2222 = vmul.f32 %v2213, 1.442695
        %v2223 = vpow.pop %v2222
        %v2224 = vmul.f32 %v2214, 1.442695
        %v2225 = vpow.pop %v2224
        %v2226 = vmul.f32 %v2215, 1.442695
        %v2227 = vpow.pop %v2226
        %v2228 = vmul.f32 %v2216, 1.442695
        %v2229 = vpow.pop %v2228
        %v2230 = vmul.f32 %v2217, 1.442695
        %v2231 = vpow.pop %v2230
        %v2232 = vmul.f32 %v2218, 1.442695
        %v2233 = vpow.pop %v2232
        %v2234 = vmul.f32 %v2219, 1.442695
        %v2235 = vpow.pop %v2234
        %v2236 = vsub.f32 %v2221, 1.0
        %v2237 = vsub.f32 %v2223, 1.0
        %v2238 = vsub.f32 %v2225, 1.0
        %v2239 = vsub.f32 %v2227, 1.0
        %v2240 = vsub.f32 %v2229, 1.0
        %v2241 = vsub.f32 %v2231, 1.0
        %v2242 = vsub.f32 %v2233, 1.0
        %v2243 = vsub.f32 %v2235, 1.0
        %v2244 = vmul.f32 %v2236, 1.6732632
        %v2245 = vmul.f32 %v2237, 1.6732632
        %v2246 = vmul.f32 %v2238, 1.6732632
        %v2247 = vmul.f32 %v2239, 1.6732632
        %v2248 = vmul.f32 %v2240, 1.6732632
        %v2249 = vmul.f32 %v2241, 1.6732632
        %v2250 = vmul.f32 %v2242, 1.6732632
        %v2251 = vmul.f32 %v2243, 1.6732632
        %v2252 = vadd.f32 %v2204, %v2244
        %v2253 = vadd.f32 %v2205, %v2245
        %v2254 = vadd.f32 %v2206, %v2246
        %v2255 = vadd.f32 %v2207, %v2247
        %v2256 = vadd.f32 %v2208, %v2248
        %v2257 = vadd.f32 %v2209, %v2249
        %v2258 = vadd.f32 %v2210, %v2250
        %v2259 = vadd.f32 %v2211, %v2251
        %v2260 = vmul.f32 %v2252, 1.050701
        %v2261 = vmul.f32 %v2253, 1.050701
        %v2262 = vmul.f32 %v2254, 1.050701
        %v2263 = vmul.f32 %v2255, 1.050701
        %v2264 = vmul.f32 %v2256, 1.050701
        %v2265 = vmul.f32 %v2257, 1.050701
        %v2266 = vmul.f32 %v2258, 1.050701
        %v2267 = vmul.f32 %v2259, 1.050701
        %v2268 = vpack.c.bf16 %v2261, %v2260
        %v2269 = vpack.c.bf16 %v2263, %v2262
        %v2270 = vpack.c.bf16 %v2265, %v2264
        %v2271 = vpack.c.bf16 %v2267, %v2266
        %s2272 = scalar_lea.vmem %s3, 640
        %v2273 = vld [vmem:[%s2272] sm:$0xf]
        %v2274 = vld [vmem:[%s2272 + $0x4] sm:$0xf]
        %v2275 = vld [vmem:[%s2272 + $0x8] sm:$0xf]
        %v2276 = vld [vmem:[%s2272 + $0xc] sm:$0xf]
        %v2277 = vld [vmem:[%s2272 + $0x10] sm:$0xf]
        %v2278 = vld [vmem:[%s2272 + $0x14] sm:$0xf]
        %v2279 = vld [vmem:[%s2272 + $0x18] sm:$0xf]
        %v2280 = vld [vmem:[%s2272 + $0x1c] sm:$0xf]
        %v2281 = vld [vmem:[%s2272 + $0x20] sm:$0xf]
        %v2282 = vld [vmem:[%s2272 + $0x24] sm:$0xf]
        %v2283 = vld [vmem:[%s2272 + $0x28] sm:$0xf]
        %v2284 = vld [vmem:[%s2272 + $0x2c] sm:$0xf]
        %v2285 = vld [vmem:[%s2272 + $0x30] sm:$0xf]
        %v2286 = vld [vmem:[%s2272 + $0x34] sm:$0xf]
        %v2287 = vld [vmem:[%s2272 + $0x38] sm:$0xf]
        %v2288 = vld [vmem:[%s2272 + $0x3c] sm:$0xf]
        %v2289 = vld [vmem:[%s2 + $0xa] sm:$0x1]
        %v2290 = vlaneseq
        %v2291 = vshrl.u32 %v2290, 7
        %v2292 = vsub.s32 0, %v2291
        %v2293 = vrot.slane %v2289, %v2292
        %v2310 = vunpack.c.l.b16 %v2273
        %v2311 = vunpack.c.l.b16 %v2274
        %v2312 = vunpack.c.l.b16 %v2275
        %v2313 = vunpack.c.l.b16 %v2276
        %v2314 = vunpack.c.l.b16 %v2277
        %v2315 = vunpack.c.l.b16 %v2278
        %v2316 = vunpack.c.l.b16 %v2279
        %v2317 = vunpack.c.l.b16 %v2280
        %v2318 = vunpack.c.l.b16 %v2281
        %v2319 = vunpack.c.l.b16 %v2282
        %v2320 = vunpack.c.l.b16 %v2283
        %v2321 = vunpack.c.l.b16 %v2284
        %v2322 = vunpack.c.l.b16 %v2285
        %v2323 = vunpack.c.l.b16 %v2286
        %v2324 = vunpack.c.l.b16 %v2287
        %v2325 = vunpack.c.l.b16 %v2288
        %v2326 = vpack.c.b16 %v2311, %v2310
        %v2327 = vpack.c.b16 %v2313, %v2312
        %v2328 = vpack.c.b16 %v2315, %v2314
        %v2329 = vpack.c.b16 %v2317, %v2316
        %v2330 = vpack.c.b16 %v2319, %v2318
        %v2331 = vpack.c.b16 %v2321, %v2320
        %v2332 = vpack.c.b16 %v2323, %v2322
        %v2333 = vpack.c.b16 %v2325, %v2324
        %2342 = vmatprep.subr.bf16.mxu0 0
        %2343 = vmatpush1.bf16.msra.mxu0 %v2326
        %2344 = vmatprep.subr.bf16.mxu0 0
        %2345 = vmatpush1.bf16.msra.mxu0 %v2327
        %2346 = vmatprep.subr.bf16.mxu0 0
        %2347 = vmatpush1.bf16.msra.mxu0 %v2328
        %2348 = vmatprep.subr.bf16.mxu0 0
        %2349 = vmatpush1.bf16.msra.mxu0 %v2329
        %2350 = vmatprep.subr.bf16.mxu0 0
        %2351 = vmatpush1.bf16.msra.mxu0 %v2330
        %2352 = vmatprep.subr.bf16.mxu0 0
        %2353 = vmatpush1.bf16.msra.mxu0 %v2331
        %2354 = vmatprep.subr.bf16.mxu0 0
        %2355 = vmatpush1.bf16.msra.mxu0 %v2332
        %2356 = vmatprep.subr.bf16.mxu0 0
        %2357 = vmatpush1.bf16.msra.mxu0 %v2333
        %2358 = vmatprep.subr.bf16.mxu0 0
        %2359 = vmatpush1.bf16.msra.mxu0 0
        %2360 = vmatprep.subr.bf16.mxu0 0
        %2361 = vmatpush1.bf16.msra.mxu0 0
        %2362 = vmatprep.subr.bf16.mxu0 0
        %2363 = vmatpush1.bf16.msra.mxu0 0
        %2364 = vmatprep.subr.bf16.mxu0 0
        %2365 = vmatpush1.bf16.msra.mxu0 0
        %2366 = vmatprep.subr.bf16.mxu0 0
        %2367 = vmatpush1.bf16.msra.mxu0 0
        %2368 = vmatprep.subr.bf16.mxu0 0
        %2369 = vmatpush1.bf16.msra.mxu0 0
        %2370 = vmatprep.subr.bf16.mxu0 0
        %2371 = vmatpush1.bf16.msra.mxu0 0
        %2372 = vmatprep.subr.bf16.mxu0 0
        %2373 = vmatpush1.bf16.msra.mxu0 0
        %2374 = vmatprep.mubr.bf16.mxu0 0
        %2375 = vmatmul.mubr.bf16.gmra.mrb[0].mxu0 %v2268
        %v2376 = vpop.f32.mrb[0].mxu0
        %v2377 = vadd.f32 %v2293, %v2376
        %v2378 = vpop.f32.mrb[0].mxu0
        %v2379 = vpop.f32.mrb[0].mxu0
        %v2380 = vadd.f32 %v2293, %v2379
        %v2381 = vpop.f32.mrb[0].mxu0
        %2382 = vmatprep.mubr.bf16.mxu0 0
        %2383 = vmatmul.mubr.bf16.gmra.mrb[0].mxu0 %v2269
        %v2384 = vpop.f32.mrb[0].mxu0
        %v2385 = vadd.f32 %v2293, %v2384
        %v2386 = vpop.f32.mrb[0].mxu0
        %v2387 = vpop.f32.mrb[0].mxu0
        %v2388 = vadd.f32 %v2293, %v2387
        %v2389 = vpop.f32.mrb[0].mxu0
        %2390 = vmatprep.mubr.bf16.mxu0 0
        %2391 = vmatmul.mubr.bf16.gmra.mrb[0].mxu0 %v2270
        %v2392 = vpop.f32.mrb[0].mxu0
        %v2393 = vadd.f32 %v2293, %v2392
        %v2394 = vpop.f32.mrb[0].mxu0
        %v2395 = vpop.f32.mrb[0].mxu0
        %v2396 = vadd.f32 %v2293, %v2395
        %v2397 = vpop.f32.mrb[0].mxu0
        %2398 = vmatprep.mubr.bf16.mxu0 0
        %2399 = vmatmul.mubr.bf16.gmra.mrb[0].mxu0 %v2271
        %v2400 = vpop.f32.mrb[0].mxu0
        %v2401 = vadd.f32 %v2293, %v2400
        %v2402 = vpop.f32.mrb[0].mxu0
        %v2403 = vpop.f32.mrb[0].mxu0
        %v2404 = vadd.f32 %v2293, %v2403
        %v2405 = vpop.f32.mrb[0].mxu0
        %2406 = vdwg.mxu0
        %v2407 = vsub.f32 0.0, %v2377
        %v2408 = vsub.f32 0.0, %v2380
        %v2409 = vsub.f32 0.0, %v2385
        %v2410 = vsub.f32 0.0, %v2388
        %v2411 = vsub.f32 0.0, %v2393
        %v2412 = vsub.f32 0.0, %v2396
        %v2413 = vsub.f32 0.0, %v2401
        %v2414 = vsub.f32 0.0, %v2404
        %v2415 = vmul.f32 %v2407, 1.442695
        %v2416 = vpow.pop %v2415
        %v2417 = vmul.f32 %v2408, 1.442695
        %v2418 = vpow.pop %v2417
        %v2419 = vmul.f32 %v2409, 1.442695
        %v2420 = vpow.pop %v2419
        %v2421 = vmul.f32 %v2410, 1.442695
        %v2422 = vpow.pop %v2421
        %v2423 = vmul.f32 %v2411, 1.442695
        %v2424 = vpow.pop %v2423
        %v2425 = vmul.f32 %v2412, 1.442695
        %v2426 = vpow.pop %v2425
        %v2427 = vmul.f32 %v2413, 1.442695
        %v2428 = vpow.pop %v2427
        %v2429 = vmul.f32 %v2414, 1.442695
        %v2430 = vpow.pop %v2429
        %v2431 = vadd.f32 %v2416, 1.0
        %v2432 = vadd.f32 %v2418, 1.0
        %v2433 = vadd.f32 %v2420, 1.0
        %v2434 = vadd.f32 %v2422, 1.0
        %v2435 = vadd.f32 %v2424, 1.0
        %v2436 = vadd.f32 %v2426, 1.0
        %v2437 = vadd.f32 %v2428, 1.0
        %v2438 = vadd.f32 %v2430, 1.0
        %v2439 = vrcp.pop %v2431
        %v2440 = vrcp.pop %v2432
        %v2441 = vrcp.pop %v2433
        %v2442 = vrcp.pop %v2434
        %v2443 = vrcp.pop %v2435
        %v2444 = vrcp.pop %v2436
        %v2445 = vrcp.pop %v2437
        %v2446 = vrcp.pop %v2438
        %2447 = vst [vmem:[%s262] sm:$0xff] %v2439
        %2448 = vst [vmem:[%s262 + $0x8] sm:$0xff] %v2440
        %2449 = vst [vmem:[%s262 + $0x10] sm:$0xff] %v2441
        %2450 = vst [vmem:[%s262 + $0x18] sm:$0xff] %v2442
        %2451 = vst [vmem:[%s262 + $0x20] sm:$0xff] %v2443
        %2452 = vst [vmem:[%s262 + $0x28] sm:$0xff] %v2444
        %2453 = vst [vmem:[%s262 + $0x30] sm:$0xff] %v2445
        %2454 = vst [vmem:[%s262 + $0x38] sm:$0xff] %v2446
        %s2455 = sand.u32 %s123, 1
        %s2456 = scalar_lea.sflag [#allocation3], %s2455
        %s2457 = sand.u32 %s123, 1
        %s2458 = smul.addr %s2457, 64
        %s2459 = scalar_lea.vmem [#allocation2], %s2458
        %s2460 = smul.u32 8, %s21
        %p2461 = scmp.lt.s32.totalorder %s2460, 31
        %s2462 = scalar_select %p2461, %s2460, 31
        %s2463 = smul.addr %s2462, 8
        %s2464 = scalar_lea.vmem %s5, %s2463
        %s2465 = smul.u32 8, %s21
        %p2466 = scmp.lt.s32.totalorder %s2465, 31
        %s2467 = scalar_select %p2466, %s2465, 31
        %s2468 = smul.addr %s2467, 8
        %s2469 = scalar_lea.vmem %s6, %s2468
        // Predicated region
        $region37: #{vae_forward.1} parent=35 // pred_check
          %p2470 = pneg %p133
        $region38: #{vae_forward.1} parent=35 // pred_check_branch
          %2472 = sbr.rel (%p2470) target = $region40
        $region39: #{vae_forward.1} parent=35 // pred_region
          %s2473 = smul.u32 8, %s21
          %s2475 = ssub.s32 1024, 1024
          %2476 = vsyncadd %s2456, %s2475
          %s2477 = smul.addr %s2473, 128
          %s2478 = scalar_lea.hbm %s4, %s2477
          %s2479 = sshll.u32 %s2459, 4
          %s2480 = int_to_ptr.vmem [resolvable:$true] %s2479
          %2485 = dma.vmem_to_hbm [thread:$0]  %s2480, 1024, %s2478, %s2456, 128, 128, 8
        $region40: #{vae_forward.1} parent=35 // pred_fallthru
          _
        // Predicated region
        $region41: #{vae_forward.1} parent=35 // pred_check
          %p2486 = pneg %p159
        $region42: #{vae_forward.1} parent=35 // pred_check_branch
          %2488 = sbr.rel (%p2486) target = $region44
        $region43: #{vae_forward.1} parent=35 // pred_region
          %s2489 = smul.u32 8, %s21
        $region44: #{vae_forward.1} parent=35 // pred_fallthru
          _
        // Predicated region
        $region45: #{vae_forward.1} parent=35 // pred_check
          %p2490 = pneg %p185
        $region46: #{vae_forward.1} parent=35 // pred_check_branch
          %2492 = sbr.rel (%p2490) target = $region48
        $region47: #{vae_forward.1} parent=35 // pred_region
          %s2493 = smul.u32 8, %s21
        $region48: #{vae_forward.1} parent=35 // pred_fallthru
          _
      $region36: #{vae_forward.1} parent=5 // pred_fallthru
        _
      %p2494 = scmp.le.s32.totalorder 2, %s16
      // Predicated region
      $region49: #{vae_forward.1} parent=5 // pred_check
        %p2495 = pneg %p2494
      $region50: #{vae_forward.1} parent=5 // pred_check_branch
        %2497 = sbr.rel (%p2495) target = $region52
      $region51: #{vae_forward.1} parent=5 // pred_region
        %s2498 = ssub.s32 %s16, 2
        // Predicated region
        $region53: #{vae_forward.1} parent=51 // pred_check
          %p2499 = pneg %p139
        $region54: #{vae_forward.1} parent=51 // pred_check_branch
          %2501 = sbr.rel (%p2499) target = $region56
        $region55: #{vae_forward.1} parent=51 // pred_region
          %s2502 = sand.u32 %s124, 1
          %s2503 = scalar_lea.sflag [#allocation3], %s2502
          %s2504 = sand.u32 %s124, 1
          %s2505 = smul.addr %s2504, 64
          %s2506 = scalar_lea.vmem [#allocation2], %s2505
          %2507 = dma.done %s2503, 1024
        $region56: #{vae_forward.1} parent=51 // pred_fallthru
          _
        // Predicated region
        $region57: #{vae_forward.1} parent=51 // pred_check
          %p2508 = pneg %p165
        $region58: #{vae_forward.1} parent=51 // pred_check_branch
          %2510 = sbr.rel (%p2508) target = $region60
        $region59: #{vae_forward.1} parent=51 // pred_region
          %s2511 = smul.u32 8, %s22
          %p2512 = scmp.lt.s32.totalorder %s2511, 31
          %s2513 = scalar_select %p2512, %s2511, 31
          %s2514 = smul.addr %s2513, 8
          %s2515 = scalar_lea.vmem %s5, %s2514
        $region60: #{vae_forward.1} parent=51 // pred_fallthru
          _
        // Predicated region
        $region61: #{vae_forward.1} parent=51 // pred_check
          %p2516 = pneg %p191
        $region62: #{vae_forward.1} parent=51 // pred_check_branch
          %2518 = sbr.rel (%p2516) target = $region64
        $region63: #{vae_forward.1} parent=51 // pred_region
          %s2519 = smul.u32 8, %s22
          %p2520 = scmp.lt.s32.totalorder %s2519, 31
          %s2521 = scalar_select %p2520, %s2519, 31
          %s2522 = smul.addr %s2521, 8
          %s2523 = scalar_lea.vmem %s6, %s2522
        $region64: #{vae_forward.1} parent=51 // pred_fallthru
          _
      $region52: #{vae_forward.1} parent=5 // pred_fallthru
        _
    $region6: #{vae_forward.1} parent=1 // loop_footer
      %s20 = sadd.s32 1, %s16
    $region7: #{vae_forward.1} parent=1 // loop_footer_branch
      %15 = sbr.rel target = $region3
    $region8: #{vae_forward.1} parent=1 // loop_exit
      _
    %2524 = vsyncpa [#allocation3], 1
    %s2525 = scalar_lea.sflag [#allocation3], 1
    %2526 = vsyncpa %s2525, 1

</llo_original>
